<compile_context>
chip_gen: v6e
topology: v6e:2x2x1
jax: 0.10.0
libtpu: 0.0.40
codegen_flags: <defaults>
</compile_context>

<pallas_src>
import jax
import jax.numpy as jnp
from jax import lax
from jax.experimental import pallas as pl
from jax.experimental.pallas import tpu as pltpu


# ----------------------------- Pallas kernel -----------------------------

def _layernorm(x, g, b, eps=1e-5):
    mu = jnp.mean(x, axis=-1, keepdims=True)
    var = jnp.mean((x - mu) ** 2, axis=-1, keepdims=True)
    return (x - mu) * lax.rsqrt(var + eps) * g + b


def lm_kernel(lens_ref,                        # (Bt, 1)  int32 valid lengths
              x_ref,                           # (Bt, S, H) bf16 token embeddings
              xlast_ref,                       # (Bt, H)  f32 last-token embeddings
              wq_ref,                          # (H, H)   bf16
              wkv_ref,                         # (H, 2H)  bf16 fused [K | V]
              wo_ref,                          # (H, H)   bf16
              w1_ref, w2_ref,                  # (H, F) / (F, H) bf16
              ln_ref,                          # (4, H)   f32: ln1g, ln1b, ln2g, ln2b
              bias_ref,                        # (1, F+H) f32: [b1 | b2]
              out_ref):                        # (Bt, H)  f32
    Bt, S, H = x_ref.shape
    F = w1_ref.shape[1]

    ln1g, ln1b = ln_ref[0:1, :], ln_ref[1:2, :]
    ln2g, ln2b = ln_ref[2:3, :], ln_ref[3:4, :]
    b1 = bias_ref[:, :F]                      # (1, F)  static lane-aligned slice
    b2 = bias_ref[:, F:]                      # (1, H)

    # ---- K / V for every row: one fused (Bt*S, H) x (H, 2H) GEMM -----------
    x_all = x_ref[...].astype(jnp.float32).reshape(Bt * S, H)
    h_all = _layernorm(x_all, ln1g, ln1b)                       # f32 elementwise
    kv = jnp.dot(h_all.astype(jnp.bfloat16), wkv_ref[...],
                 preferred_element_type=jnp.float32)            # (Bt*S, 2H) f32
    k_bf = kv[:, :H].astype(jnp.bfloat16)
    v_bf = kv[:, H:].astype(jnp.bfloat16)

    # ---- Boolean block-diagonal key mask from iota + length vector ---------
    lens_vec = lens_ref[...]                                    # (Bt, 1) int32
    row = lax.broadcasted_iota(jnp.int32, (Bt, Bt * S), 0)
    col = lax.broadcasted_iota(jnp.int32, (Bt, Bt * S), 1)
    valid = (col >= row * S) & (col < row * S + lens_vec)       # (Bt, Bt*S) bool

    # ---- Query / attention / FFN on the Bt last-token rows only ------------
    x_last = xlast_ref[...]                                     # (Bt, H) f32
    h_q = _layernorm(x_last, ln1g, ln1b)
    q = jnp.dot(h_q.astype(jnp.bfloat16), wq_ref[...],
                preferred_element_type=jnp.float32)             # (Bt, H)
    # NT-form contraction: no explicit transpose of the K tile.
    s = lax.dot_general(q.astype(jnp.bfloat16), k_bf,
                        dimension_numbers=(((1,), (1,)), ((), ())),
                        preferred_element_type=jnp.float32)     # (Bt, Bt*S)
    s = s * (H ** -0.5)
    s = jnp.where(valid, s, jnp.float32(-1e9))                  # single vsel
    s = s - jnp.max(s, axis=-1, keepdims=True)
    p = jnp.exp(s)                                              # f32 EUP
    inv = pl.reciprocal(jnp.sum(p, axis=-1, keepdims=True), approx=True)
    attn = jnp.dot(p.astype(jnp.bfloat16), v_bf,
                   preferred_element_type=jnp.float32) * inv    # (Bt, H)

    attn_o = jnp.dot(attn.astype(jnp.bfloat16), wo_ref[...],
                     preferred_element_type=jnp.float32)
    x1 = x_last + attn_o                                        # residual, f32

    h2 = _layernorm(x1, ln2g, ln2b)
    f = jnp.dot(h2.astype(jnp.bfloat16), w1_ref[...],
                preferred_element_type=jnp.float32) + b1
    f = jnp.maximum(f, 0.0)
    f2 = jnp.dot(f.astype(jnp.bfloat16), w2_ref[...],
                 preferred_element_type=jnp.float32) + b2
    out_ref[...] = x1 + f2                                      # dense (Bt,H) store


# ------------------------------- wrapper ---------------------------------

def lm_forward(x_tokens, attention_mask, params, block_b=8):
    """Forward pass of LM. x_tokens: [B,S] (or [S]) int32; attention_mask same shape."""
    if x_tokens.ndim == 1:                       # mirror the torch unsqueeze path
        x_tokens = x_tokens[None, :]
        attention_mask = attention_mask[None, :]
    B, S = x_tokens.shape
    H = params["emb"].shape[1]
    F = params["w1"].shape[1]

    Bt = max(1, min(block_b, B))
    nb = (B + Bt - 1) // Bt
    B_pad = nb * Bt

    # Precondition: every sequence has >= 1 valid token (reference gathers
    # index sum(mask)-1, undefined for an all-masked row).  Clamp so a
    # pathological all-masked row attends to its own first token instead of
    # leaking onto other sequences in the stacked block; padding rows use 1.
    lens = jnp.maximum(attention_mask.astype(jnp.int32).sum(axis=1), 1)
    if B_pad != B:
        x_tokens = jnp.concatenate(
            [x_tokens, jnp.zeros((B_pad - B, S), x_tokens.dtype)], axis=0)
        lens = jnp.concatenate(
            [lens, jnp.ones((B_pad - B,), jnp.int32)], axis=0)

    # Glue: embedding lookup + last-valid-token (input-side) gather.
    x_emb_f32 = jnp.take(params["emb"], x_tokens, axis=0)            # (B_pad,S,H)
    gather_idx = jnp.broadcast_to((lens - 1)[:, None, None], (B_pad, 1, H))
    x_last = jnp.take_along_axis(x_emb_f32, gather_idx, axis=1)[:, 0, :]  # (B_pad,H) f32
    x_emb = x_emb_f32.astype(jnp.bfloat16)        # halves the dominant block DMA

    to_bf16 = lambda w: w.astype(jnp.bfloat16)                        # bf16 MXU operands
    wq, wo = to_bf16(params["wq"]), to_bf16(params["wo"])
    wkv = to_bf16(jnp.concatenate([params["wk"], params["wv"]], axis=1))   # (H, 2H)
    w1, w2 = to_bf16(params["w1"]), to_bf16(params["w2"])
    ln_pack = jnp.concatenate([params["ln1g"], params["ln1b"],
                               params["ln2g"], params["ln2b"]], axis=0)    # (4, H)
    bias_pack = jnp.concatenate([params["b1"], params["b2"]], axis=1)      # (1, F+H)
    lens2d = lens[:, None].astype(jnp.int32)                               # (B_pad, 1)

    def const(shape):
        return pl.BlockSpec(shape, lambda b, _n=len(shape): (0,) * _n)

    grid_spec = pltpu.PrefetchScalarGridSpec(
        num_scalar_prefetch=0,
        grid=(nb,),
        in_specs=[
            pl.BlockSpec((Bt, 1), lambda b: (b, 0)),           # lengths
            pl.BlockSpec((Bt, S, H), lambda b: (b, 0, 0)),     # embeddings (bf16)
            pl.BlockSpec((Bt, H), lambda b: (b, 0)),           # last-token emb (f32)
            const((H, H)), const((H, 2 * H)), const((H, H)),
            const((H, F)), const((F, H)),
            const((4, H)), const((1, F + H)),
        ],
        out_specs=pl.BlockSpec((Bt, H), lambda b: (b, 0)),     # dense (8k,128) store
    )

    # Advisory cost hint for XLA scheduling of the surrounding graph.
    flops = (2 * B_pad * S * H * 2 * H            # fused K/V GEMM
             + 2 * B_pad * H * H * 2              # wq + wo
             + 2 * B_pad * (Bt * S) * H * 2       # scores + p@v
             + 2 * B_pad * H * F * 2)             # w1 + w2
    weight_bytes = 2 * (2 * H * H + H * 2 * H + 2 * H * F) + 4 * (4 * H + F + H)
    bytes_accessed = (B_pad * S * H * 2           # bf16 embeddings
                      + B_pad * H * 4 * 2         # x_last in + out
                      + B_pad * 4 + weight_bytes)

    out = pl.pallas_call(
        lm_kernel,
        out_shape=jax.ShapeDtypeStruct((B_pad, H), jnp.float32),
        grid_spec=grid_spec,
        compiler_params=pltpu.CompilerParams(
            dimension_semantics=("parallel",),    # even nb -> both v7x TCs busy
            vmem_limit_bytes=32 * 1024 * 1024),   # explicit headroom (v7x-safe)
        cost_estimate=pl.CostEstimate(flops=flops,
                                      transcendentals=B_pad * Bt * S,
                                      bytes_accessed=bytes_accessed),
    )(lens2d, x_emb, x_last, wq, wkv, wo, w1, w2, ln_pack, bias_pack)

    return out[:B]                                               # (B, H)


# ----------------------- pure-JAX reference (check) -----------------------

def lm_reference(x_tokens, attention_mask, params):
    if x_tokens.ndim == 1:
        x_tokens = x_tokens[None, :]
        attention_mask = attention_mask[None, :]
    x = jnp.take(params["emb"], x_tokens, axis=0)
    mask = attention_mask.astype(jnp.float32)
    H = x.shape[-1]

    def ln(z, g, b):
        mu = z.mean(-1, keepdims=True)
        var = ((z - mu) ** 2).mean(-1, keepdims=True)
        return (z - mu) / jnp.sqrt(var + 1e-5) * g + b

    h = ln(x, params["ln1g"], params["ln1b"])
    q, k, v = h @ params["wq"], h @ params["wk"], h @ params["wv"]
    s = jnp.einsum("bqh,bkh->bqk", q, k) / jnp.sqrt(jnp.float32(H))
    s = s + (1.0 - mask)[:, None, :] * (-1e9)
    p = jax.nn.softmax(s, axis=-1)
    a = jnp.einsum("bqk,bkh->bqh", p, v) @ params["wo"]
    x1 = x + a
    h2 = ln(x1, params["ln2g"], params["ln2b"])
    f = jnp.maximum(h2 @ params["w1"] + params["b1"], 0.0) @ params["w2"] + params["b2"]
    hidden = x1 + f
    last = (mask.sum(1) - 1).astype(jnp.int32)
    return hidden[jnp.arange(x.shape[0]), last]


# --------------------------------- main -----------------------------------

def make_params(key, vocab, hidden, ffn):
    ks = jax.random.split(key, 9)
    s = 0.05

    def w(k, shape):
        # bf16-representable values so the kernel's bf16 MXU operands / bf16
        # embedding DMA are exact; reference and kernel use identical values.
        return (jax.random.normal(k, shape, jnp.float32) * s
                ).astype(jnp.bfloat16).astype(jnp.float32)

    return {
        "emb": w(ks[0], (vocab, hidden)),
        "wq": w(ks[1], (hidden, hidden)),
        "wk": w(ks[2], (hidden, hidden)),
        "wv": w(ks[3], (hidden, hidden)),
        "wo": w(ks[4], (hidden, hidden)),
        "w1": w(ks[5], (hidden, ffn)),
        "b1": jax.random.normal(ks[6], (1, ffn), jnp.float32) * s,
        "w2": w(ks[7], (ffn, hidden)),
        "b2": jax.random.normal(ks[8], (1, hidden), jnp.float32) * s,
        "ln1g": jnp.ones((1, hidden), jnp.float32),
        "ln1b": jnp.zeros((1, hidden), jnp.float32),
        "ln2g": jnp.ones((1, hidden), jnp.float32),
        "ln2b": jnp.zeros((1, hidden), jnp.float32),
    }


if __name__ == "__main__":
    # H/FFN lane-dense (x128); B=16 with Bt=8 -> grid=(2,) (even, v7x-friendly).
    B, S, H, FFN, VOCAB = 16, 16, 128, 256, 64

    key = jax.random.PRNGKey(0)
    k_par, k_tok = jax.random.split(key)
    params = make_params(k_par, VOCAB, H, FFN)

    x_tokens = jax.random.randint(k_tok, (B, S), 0, VOCAB, dtype=jnp.int32)
    lengths = jnp.array([S, 5, 9, 1, 12, 3, S, 7, 2, 10, 14, 6, 1, 8, S, 4],
                        dtype=jnp.int32)                     # per-seq valid lens
    attention_mask = (jnp.arange(S)[None, :] < lengths[:, None]).astype(jnp.int32)

    emb = lm_forward(x_tokens, attention_mask, params, block_b=8)
    emb = jax.block_until_ready(emb)

    ref = lm_reference(x_tokens, attention_mask, params)
    assert emb.shape == (B, H)
    # bf16 activation operands + approx reciprocal vs. the full-f32 reference.
    assert jnp.allclose(emb, ref, atol=2e-2, rtol=2e-2), "mismatch vs reference"

    print("KERNEL_OK")
</pallas_src>

<mosaic_0001>
module attributes {stable_mosaic.version = 11 : i64} {
  func.func @lm_kernel(%arg0: i32, %arg1: memref<8x1xi32, #tpu.memory_space<vmem>>, %arg2: memref<8x16x128xbf16, #tpu.memory_space<vmem>>, %arg3: memref<8x128xf32, #tpu.memory_space<vmem>>, %arg4: memref<128x128xbf16, #tpu.memory_space<vmem>>, %arg5: memref<128x256xbf16, #tpu.memory_space<vmem>>, %arg6: memref<128x128xbf16, #tpu.memory_space<vmem>>, %arg7: memref<128x256xbf16, #tpu.memory_space<vmem>>, %arg8: memref<256x128xbf16, #tpu.memory_space<vmem>>, %arg9: memref<4x128xf32, #tpu.memory_space<vmem>>, %arg10: memref<1x384xf32, #tpu.memory_space<vmem>>, %arg11: memref<8x128xf32, #tpu.memory_space<vmem>>) attributes {dimension_semantics = [#tpu.dimension_semantics<parallel>], iteration_bounds = array<i64: 2>, scalar_prefetch = 0 : i64, scratch_operands = 0 : i64, tpu.core_type = #tpu.core_type<tc>, window_params = [{transform_indices = @transform_0, window_bounds = array<i64: 8, 1>}, {transform_indices = @transform_1, window_bounds = array<i64: 8, 16, 128>}, {transform_indices = @transform_2, window_bounds = array<i64: 8, 128>}, {pipeline_mode = #tpu.pipeline_mode<synchronous>, transform_indices = @transform_3, window_bounds = array<i64: 128, 128>}, {pipeline_mode = #tpu.pipeline_mode<synchronous>, transform_indices = @transform_4, window_bounds = array<i64: 128, 256>}, {pipeline_mode = #tpu.pipeline_mode<synchronous>, transform_indices = @transform_5, window_bounds = array<i64: 128, 128>}, {pipeline_mode = #tpu.pipeline_mode<synchronous>, transform_indices = @transform_6, window_bounds = array<i64: 128, 256>}, {pipeline_mode = #tpu.pipeline_mode<synchronous>, transform_indices = @transform_7, window_bounds = array<i64: 256, 128>}, {pipeline_mode = #tpu.pipeline_mode<synchronous>, transform_indices = @transform_8, window_bounds = array<i64: 4, 128>}, {pipeline_mode = #tpu.pipeline_mode<synchronous>, transform_indices = @transform_9, window_bounds = array<i64: 1, 384>}, {transform_indices = @transform_10, window_bounds = array<i64: 8, 128>}]} {
    %c0 = arith.constant 0 : index
    %c0_0 = arith.constant 0 : index
    %0 = vector.load %arg9[%c0, %c0_0] : memref<4x128xf32, #tpu.memory_space<vmem>>, vector<1x128xf32>
    %c1 = arith.constant 1 : index
    %c0_1 = arith.constant 0 : index
    %1 = vector.load %arg9[%c1, %c0_1] : memref<4x128xf32, #tpu.memory_space<vmem>>, vector<1x128xf32>
    %c2 = arith.constant 2 : index
    %c0_2 = arith.constant 0 : index
    %2 = vector.load %arg9[%c2, %c0_2] : memref<4x128xf32, #tpu.memory_space<vmem>>, vector<1x128xf32>
    %c3 = arith.constant 3 : index
    %c0_3 = arith.constant 0 : index
    %3 = vector.load %arg9[%c3, %c0_3] : memref<4x128xf32, #tpu.memory_space<vmem>>, vector<1x128xf32>
    %c0_4 = arith.constant 0 : index
    %c0_5 = arith.constant 0 : index
    %4 = vector.load %arg10[%c0_4, %c0_5] : memref<1x384xf32, #tpu.memory_space<vmem>>, vector<1x256xf32>
    %c0_6 = arith.constant 0 : index
    %c256 = arith.constant 256 : index
    %5 = vector.load %arg10[%c0_6, %c256] : memref<1x384xf32, #tpu.memory_space<vmem>>, vector<1x128xf32>
    %c0_7 = arith.constant 0 : index
    %c0_8 = arith.constant 0 : index
    %c0_9 = arith.constant 0 : index
    %6 = vector.load %arg2[%c0_7, %c0_8, %c0_9] : memref<8x16x128xbf16, #tpu.memory_space<vmem>>, vector<8x16x128xbf16>
    %7 = arith.extf %6 : vector<8x16x128xbf16> to vector<8x16x128xf32>
    %8 = vector.shape_cast %7 : vector<8x16x128xf32> to vector<128x128xf32>
    %cst = arith.constant dense<0.000000e+00> : vector<128xf32>
    %9 = vector.multi_reduction <add>, %8, %cst [1] : vector<128x128xf32> to vector<128xf32>
    %10 = vector.shape_cast %9 : vector<128xf32> to vector<128x1xf32>
    %cst_10 = arith.constant 1.280000e+02 : f32
    %11 = vector.broadcast %cst_10 : f32 to vector<128x1xf32>
    %12 = arith.divf %10, %11 : vector<128x1xf32>
    %13 = vector.broadcast %12 : vector<128x1xf32> to vector<128x128xf32>
    %14 = arith.subf %8, %13 : vector<128x128xf32>
    %15 = arith.mulf %14, %14 : vector<128x128xf32>
    %cst_11 = arith.constant dense<0.000000e+00> : vector<128xf32>
    %16 = vector.multi_reduction <add>, %15, %cst_11 [1] : vector<128x128xf32> to vector<128xf32>
    %17 = vector.shape_cast %16 : vector<128xf32> to vector<128x1xf32>
    %cst_12 = arith.constant 1.280000e+02 : f32
    %18 = vector.broadcast %cst_12 : f32 to vector<128x1xf32>
    %19 = arith.divf %17, %18 : vector<128x1xf32>
    %20 = vector.broadcast %12 : vector<128x1xf32> to vector<128x128xf32>
    %21 = arith.subf %8, %20 : vector<128x128xf32>
    %cst_13 = arith.constant 9.99999974E-6 : f32
    %22 = vector.broadcast %cst_13 : f32 to vector<128x1xf32>
    %23 = arith.addf %19, %22 : vector<128x1xf32>
    %24 = math.rsqrt %23 : vector<128x1xf32>
    %25 = vector.broadcast %24 : vector<128x1xf32> to vector<128x128xf32>
    %26 = arith.mulf %21, %25 : vector<128x128xf32>
    %27 = vector.broadcast %0 : vector<1x128xf32> to vector<128x128xf32>
    %28 = arith.mulf %26, %27 : vector<128x128xf32>
    %29 = vector.broadcast %1 : vector<1x128xf32> to vector<128x128xf32>
    %30 = arith.addf %28, %29 : vector<128x128xf32>
    %31 = arith.truncf %30 : vector<128x128xf32> to vector<128x128xbf16>
    %c0_14 = arith.constant 0 : index
    %c0_15 = arith.constant 0 : index
    %32 = vector.load %arg5[%c0_14, %c0_15] : memref<128x256xbf16, #tpu.memory_space<vmem>>, vector<128x256xbf16>
    %cst_16 = arith.constant dense<0.000000e+00> : vector<128x256xf32>
    %33 = tpu.matmul %31, %32, %cst_16 {dimension_numbers = #tpu.dot_dimension_numbers<[1], [0], [0], [1], [0, 0, 1, 1], [], []>} : vector<128x128xbf16>, vector<128x256xbf16>, vector<128x256xf32> -> vector<128x256xf32>
    %34 = vector.extract_strided_slice %33 {offsets = [0, 0], sizes = [128, 128], strides = [1, 1]} : vector<128x256xf32> to vector<128x128xf32>
    %35 = arith.truncf %34 : vector<128x128xf32> to vector<128x128xbf16>
    %36 = vector.extract_strided_slice %33 {offsets = [0, 128], sizes = [128, 128], strides = [1, 1]} : vector<128x256xf32> to vector<128x128xf32>
    %37 = arith.truncf %36 : vector<128x128xf32> to vector<128x128xbf16>
    %c0_17 = arith.constant 0 : index
    %c0_18 = arith.constant 0 : index
    %38 = vector.load %arg1[%c0_17, %c0_18] : memref<8x1xi32, #tpu.memory_space<vmem>>, vector<8x1xi32>
    %39 = tpu.iota {dimensions = array<i32: 0>} : vector<8x128xi32>
    %40 = tpu.iota {dimensions = array<i32: 1>} : vector<8x128xi32>
    %c16_i32 = arith.constant 16 : i32
    %41 = vector.broadcast %c16_i32 : i32 to vector<8x128xi32>
    %42 = arith.muli %39, %41 : vector<8x128xi32>
    %43 = arith.cmpi sge, %40, %42 : vector<8x128xi32>
    %c16_i32_19 = arith.constant 16 : i32
    %44 = vector.broadcast %c16_i32_19 : i32 to vector<8x128xi32>
    %45 = arith.muli %39, %44 : vector<8x128xi32>
    %46 = vector.broadcast %38 : vector<8x1xi32> to vector<8x128xi32>
    %47 = arith.addi %45, %46 : vector<8x128xi32>
    %48 = arith.cmpi slt, %40, %47 : vector<8x128xi32>
    %49 = arith.andi %43, %48 : vector<8x128xi1>
    %c0_20 = arith.constant 0 : index
    %c0_21 = arith.constant 0 : index
    %50 = vector.load %arg3[%c0_20, %c0_21] : memref<8x128xf32, #tpu.memory_space<vmem>>, vector<8x128xf32>
    %cst_22 = arith.constant dense<0.000000e+00> : vector<8xf32>
    %51 = vector.multi_reduction <add>, %50, %cst_22 [1] : vector<8x128xf32> to vector<8xf32>
    %52 = vector.shape_cast %51 : vector<8xf32> to vector<8x1xf32>
    %cst_23 = arith.constant 1.280000e+02 : f32
    %53 = vector.broadcast %cst_23 : f32 to vector<8x1xf32>
    %54 = arith.divf %52, %53 : vector<8x1xf32>
    %55 = vector.broadcast %54 : vector<8x1xf32> to vector<8x128xf32>
    %56 = arith.subf %50, %55 : vector<8x128xf32>
    %57 = arith.mulf %56, %56 : vector<8x128xf32>
    %cst_24 = arith.constant dense<0.000000e+00> : vector<8xf32>
    %58 = vector.multi_reduction <add>, %57, %cst_24 [1] : vector<8x128xf32> to vector<8xf32>
    %59 = vector.shape_cast %58 : vector<8xf32> to vector<8x1xf32>
    %cst_25 = arith.constant 1.280000e+02 : f32
    %60 = vector.broadcast %cst_25 : f32 to vector<8x1xf32>
    %61 = arith.divf %59, %60 : vector<8x1xf32>
    %62 = vector.broadcast %54 : vector<8x1xf32> to vector<8x128xf32>
    %63 = arith.subf %50, %62 : vector<8x128xf32>
    %cst_26 = arith.constant 9.99999974E-6 : f32
    %64 = vector.broadcast %cst_26 : f32 to vector<8x1xf32>
    %65 = arith.addf %61, %64 : vector<8x1xf32>
    %66 = math.rsqrt %65 : vector<8x1xf32>
    %67 = vector.broadcast %66 : vector<8x1xf32> to vector<8x128xf32>
    %68 = arith.mulf %63, %67 : vector<8x128xf32>
    %69 = vector.broadcast %0 : vector<1x128xf32> to vector<8x128xf32>
    %70 = arith.mulf %68, %69 : vector<8x128xf32>
    %71 = vector.broadcast %1 : vector<1x128xf32> to vector<8x128xf32>
    %72 = arith.addf %70, %71 : vector<8x128xf32>
    %73 = arith.truncf %72 : vector<8x128xf32> to vector<8x128xbf16>
    %c0_27 = arith.constant 0 : index
    %c0_28 = arith.constant 0 : index
    %74 = vector.load %arg4[%c0_27, %c0_28] : memref<128x128xbf16, #tpu.memory_space<vmem>>, vector<128x128xbf16>
    %cst_29 = arith.constant dense<0.000000e+00> : vector<8x128xf32>
    %75 = tpu.matmul %73, %74, %cst_29 {dimension_numbers = #tpu.dot_dimension_numbers<[1], [0], [0], [1], [0, 0, 1, 1], [], []>} : vector<8x128xbf16>, vector<128x128xbf16>, vector<8x128xf32> -> vector<8x128xf32>
    %76 = arith.truncf %75 : vector<8x128xf32> to vector<8x128xbf16>
    %cst_30 = arith.constant dense<0.000000e+00> : vector<8x128xf32>
    %77 = tpu.matmul %76, %35, %cst_30 {dimension_numbers = #tpu.dot_dimension_numbers<[1], [1], [0], [0], [0, 0, 1, 0], [], []>} : vector<8x128xbf16>, vector<128x128xbf16>, vector<8x128xf32> -> vector<8x128xf32>
    %cst_31 = arith.constant 0.0883883461 : f32
    %78 = vector.broadcast %cst_31 : f32 to vector<8x128xf32>
    %79 = arith.mulf %77, %78 : vector<8x128xf32>
    %cst_32 = arith.constant -1.000000e+09 : f32
    %80 = vector.broadcast %cst_32 : f32 to vector<8x128xf32>
    %81 = arith.select %49, %79, %80 : vector<8x128xi1>, vector<8x128xf32>
    %cst_33 = arith.constant dense<0xFF800000> : vector<8xf32>
    %82 = vector.multi_reduction <maximumf>, %81, %cst_33 [1] : vector<8x128xf32> to vector<8xf32>
    %83 = vector.shape_cast %82 : vector<8xf32> to vector<8x1xf32>
    %84 = vector.broadcast %83 : vector<8x1xf32> to vector<8x128xf32>
    %85 = arith.subf %81, %84 : vector<8x128xf32>
    %86 = math.exp %85 : vector<8x128xf32>
    %cst_34 = arith.constant dense<0.000000e+00> : vector<8xf32>
    %87 = vector.multi_reduction <add>, %86, %cst_34 [1] : vector<8x128xf32> to vector<8xf32>
    %88 = vector.shape_cast %87 : vector<8xf32> to vector<8x1xf32>
    %89 = tpu.reciprocal %88 {approx = true} : vector<8x1xf32> -> vector<8x1xf32>
    %90 = arith.truncf %86 : vector<8x128xf32> to vector<8x128xbf16>
    %cst_35 = arith.constant dense<0.000000e+00> : vector<8x128xf32>
    %91 = tpu.matmul %90, %37, %cst_35 {dimension_numbers = #tpu.dot_dimension_numbers<[1], [0], [0], [1], [0, 0, 1, 1], [], []>} : vector<8x128xbf16>, vector<128x128xbf16>, vector<8x128xf32> -> vector<8x128xf32>
    %92 = vector.broadcast %89 : vector<8x1xf32> to vector<8x128xf32>
    %93 = arith.mulf %91, %92 : vector<8x128xf32>
    %94 = arith.truncf %93 : vector<8x128xf32> to vector<8x128xbf16>
    %c0_36 = arith.constant 0 : index
    %c0_37 = arith.constant 0 : index
    %95 = vector.load %arg6[%c0_36, %c0_37] : memref<128x128xbf16, #tpu.memory_space<vmem>>, vector<128x128xbf16>
    %cst_38 = arith.constant dense<0.000000e+00> : vector<8x128xf32>
    %96 = tpu.matmul %94, %95, %cst_38 {dimension_numbers = #tpu.dot_dimension_numbers<[1], [0], [0], [1], [0, 0, 1, 1], [], []>} : vector<8x128xbf16>, vector<128x128xbf16>, vector<8x128xf32> -> vector<8x128xf32>
    %97 = arith.addf %50, %96 : vector<8x128xf32>
    %cst_39 = arith.constant dense<0.000000e+00> : vector<8xf32>
    %98 = vector.multi_reduction <add>, %97, %cst_39 [1] : vector<8x128xf32> to vector<8xf32>
    %99 = vector.shape_cast %98 : vector<8xf32> to vector<8x1xf32>
    %cst_40 = arith.constant 1.280000e+02 : f32
    %100 = vector.broadcast %cst_40 : f32 to vector<8x1xf32>
    %101 = arith.divf %99, %100 : vector<8x1xf32>
    %102 = vector.broadcast %101 : vector<8x1xf32> to vector<8x128xf32>
    %103 = arith.subf %97, %102 : vector<8x128xf32>
    %104 = arith.mulf %103, %103 : vector<8x128xf32>
    %cst_41 = arith.constant dense<0.000000e+00> : vector<8xf32>
    %105 = vector.multi_reduction <add>, %104, %cst_41 [1] : vector<8x128xf32> to vector<8xf32>
    %106 = vector.shape_cast %105 : vector<8xf32> to vector<8x1xf32>
    %cst_42 = arith.constant 1.280000e+02 : f32
    %107 = vector.broadcast %cst_42 : f32 to vector<8x1xf32>
    %108 = arith.divf %106, %107 : vector<8x1xf32>
    %109 = vector.broadcast %101 : vector<8x1xf32> to vector<8x128xf32>
    %110 = arith.subf %97, %109 : vector<8x128xf32>
    %cst_43 = arith.constant 9.99999974E-6 : f32
    %111 = vector.broadcast %cst_43 : f32 to vector<8x1xf32>
    %112 = arith.addf %108, %111 : vector<8x1xf32>
    %113 = math.rsqrt %112 : vector<8x1xf32>
    %114 = vector.broadcast %113 : vector<8x1xf32> to vector<8x128xf32>
    %115 = arith.mulf %110, %114 : vector<8x128xf32>
    %116 = vector.broadcast %2 : vector<1x128xf32> to vector<8x128xf32>
    %117 = arith.mulf %115, %116 : vector<8x128xf32>
    %118 = vector.broadcast %3 : vector<1x128xf32> to vector<8x128xf32>
    %119 = arith.addf %117, %118 : vector<8x128xf32>
    %120 = arith.truncf %119 : vector<8x128xf32> to vector<8x128xbf16>
    %c0_44 = arith.constant 0 : index
    %c0_45 = arith.constant 0 : index
    %121 = vector.load %arg7[%c0_44, %c0_45] : memref<128x256xbf16, #tpu.memory_space<vmem>>, vector<128x256xbf16>
    %cst_46 = arith.constant dense<0.000000e+00> : vector<8x256xf32>
    %122 = tpu.matmul %120, %121, %cst_46 {dimension_numbers = #tpu.dot_dimension_numbers<[1], [0], [0], [1], [0, 0, 1, 1], [], []>} : vector<8x128xbf16>, vector<128x256xbf16>, vector<8x256xf32> -> vector<8x256xf32>
    %123 = vector.broadcast %4 : vector<1x256xf32> to vector<8x256xf32>
    %124 = arith.addf %122, %123 : vector<8x256xf32>
    %cst_47 = arith.constant 0.000000e+00 : f32
    %125 = vector.broadcast %cst_47 : f32 to vector<8x256xf32>
    %126 = arith.maximumf %124, %125 : vector<8x256xf32>
    %127 = arith.truncf %126 : vector<8x256xf32> to vector<8x256xbf16>
    %c0_48 = arith.constant 0 : index
    %c0_49 = arith.constant 0 : index
    %128 = vector.load %arg8[%c0_48, %c0_49] : memref<256x128xbf16, #tpu.memory_space<vmem>>, vector<256x128xbf16>
    %cst_50 = arith.constant dense<0.000000e+00> : vector<8x128xf32>
    %129 = tpu.matmul %127, %128, %cst_50 {dimension_numbers = #tpu.dot_dimension_numbers<[1], [0], [0], [1], [0, 0, 1, 1], [], []>} : vector<8x256xbf16>, vector<256x128xbf16>, vector<8x128xf32> -> vector<8x128xf32>
    %130 = vector.broadcast %5 : vector<1x128xf32> to vector<8x128xf32>
    %131 = arith.addf %129, %130 : vector<8x128xf32>
    %132 = arith.addf %97, %131 : vector<8x128xf32>
    %c0_51 = arith.constant 0 : index
    %c0_52 = arith.constant 0 : index
    %133 = vector.load %arg11[%c0_51, %c0_52] : memref<8x128xf32, #tpu.memory_space<vmem>>, vector<8x128xf32>
    tpu.vector_store %arg11[%c0_51, %c0_52], %132 {strides = array<i32>} : memref<8x128xf32, #tpu.memory_space<vmem>>, vector<8x128xf32>,
    return
  }
  func.func @transform_0(%arg0: i32) -> (i32, i32) {
    %c0_i32 = arith.constant 0 : i32
    %c0_i32_0 = arith.constant 0 : i32
    return %arg0, %c0_i32 : i32, i32
  }
  func.func @transform_1(%arg0: i32) -> (i32, i32, i32) {
    %c0_i32 = arith.constant 0 : i32
    %c0_i32_0 = arith.constant 0 : i32
    %c0_i32_1 = arith.constant 0 : i32
    return %arg0, %c0_i32, %c0_i32_0 : i32, i32, i32
  }
  func.func @transform_2(%arg0: i32) -> (i32, i32) {
    %c0_i32 = arith.constant 0 : i32
    %c0_i32_0 = arith.constant 0 : i32
    return %arg0, %c0_i32 : i32, i32
  }
  func.func @transform_3(%arg0: i32) -> (i32, i32) {
    %c0_i32 = arith.constant 0 : i32
    %c0_i32_0 = arith.constant 0 : i32
    %c0_i32_1 = arith.constant 0 : i32
    return %c0_i32, %c0_i32_0 : i32, i32
  }
  func.func @transform_4(%arg0: i32) -> (i32, i32) {
    %c0_i32 = arith.constant 0 : i32
    %c0_i32_0 = arith.constant 0 : i32
    %c0_i32_1 = arith.constant 0 : i32
    return %c0_i32, %c0_i32_0 : i32, i32
  }
  func.func @transform_5(%arg0: i32) -> (i32, i32) {
    %c0_i32 = arith.constant 0 : i32
    %c0_i32_0 = arith.constant 0 : i32
    %c0_i32_1 = arith.constant 0 : i32
    return %c0_i32, %c0_i32_0 : i32, i32
  }
  func.func @transform_6(%arg0: i32) -> (i32, i32) {
    %c0_i32 = arith.constant 0 : i32
    %c0_i32_0 = arith.constant 0 : i32
    %c0_i32_1 = arith.constant 0 : i32
    return %c0_i32, %c0_i32_0 : i32, i32
  }
  func.func @transform_7(%arg0: i32) -> (i32, i32) {
    %c0_i32 = arith.constant 0 : i32
    %c0_i32_0 = arith.constant 0 : i32
    %c0_i32_1 = arith.constant 0 : i32
    return %c0_i32, %c0_i32_0 : i32, i32
  }
  func.func @transform_8(%arg0: i32) -> (i32, i32) {
    %c0_i32 = arith.constant 0 : i32
    %c0_i32_0 = arith.constant 0 : i32
    %c0_i32_1 = arith.constant 0 : i32
    return %c0_i32, %c0_i32_0 : i32, i32
  }
  func.func @transform_9(%arg0: i32) -> (i32, i32) {
    %c0_i32 = arith.constant 0 : i32
    %c0_i32_0 = arith.constant 0 : i32
    %c0_i32_1 = arith.constant 0 : i32
    return %c0_i32, %c0_i32_0 : i32, i32
  }
  func.func @transform_10(%arg0: i32) -> (i32, i32) {
    %c0_i32 = arith.constant 0 : i32
    %c0_i32_0 = arith.constant 0 : i32
    return %arg0, %c0_i32 : i32, i32
  }
}

</mosaic_0001>

<llo_original>
// kernel: tpu_custom_call.1
$region0: #{tpu_custom_call.1}
  #allocation0 [shape = 'u32[]', space=smem, size = 0x4, offset = 0x4, fixed_abs, tag = 'smem constant byte address 0x4 - core index']
  #allocation1 [shape = 'u32[144,128]{1,0:T(1,128)}', space=vmem, size = 0x12000, scoped, tag = 'internal scratch']
  %s0 = inlined_call_operand.vmem [shape: s32[16,1], index: 0, kind: input, shape index: {}]
  %s1 = inlined_call_operand.hbm [shape: bf16[16,16,128], index: 1, kind: input, shape index: {}]
  %s2 = inlined_call_operand.vmem [shape: f32[16,128], index: 2, kind: input, shape index: {}]
  %s3 = inlined_call_operand.hbm [shape: bf16[128,128], index: 3, kind: input, shape index: {}]
  %s4 = inlined_call_operand.hbm [shape: bf16[128,256], index: 4, kind: input, shape index: {}]
  %s5 = inlined_call_operand.hbm [shape: bf16[128,128], index: 5, kind: input, shape index: {}]
  %s6 = inlined_call_operand.hbm [shape: bf16[128,256], index: 6, kind: input, shape index: {}]
  %s7 = inlined_call_operand.hbm [shape: bf16[256,128], index: 7, kind: input, shape index: {}]
  %s8 = inlined_call_operand.vmem [shape: f32[4,128], index: 8, kind: input, shape index: {}]
  %s9 = inlined_call_operand.vmem [shape: f32[1,384], index: 9, kind: input, shape index: {}]
  %s10 = inlined_call_operand.hbm [shape: f32[16,128], index: 10, kind: output, shape index: {}]
  %s11 = sld [smem:[#allocation0]]
  $region97: #{tpu_custom_call.1} parent=0
    _
  %s13 = ssub.s32 1, %s11
  %s14 = scalar_select 0, %s13, %s11
  $region1: #{tpu_custom_call.1} parent=0
    #allocation2 [shape = 'u8[65536]{0}', space=vmem, size = 0x10000, scoped, tag = 'input window, operand 1']
    #allocation3 [shape = 's32[2]{0}', space=sflag, size = 0x8, scoped, tag = 'scoped memory for tpu_custom_call.1']
    #allocation4 [shape = 's32[2]{0}', space=sflag, size = 0x8, scoped, tag = 'scoped memory for tpu_custom_call.1']
    #allocation5 [shape = 'u8[32768]{0}', space=vmem, size = 0x8000, scoped, tag = 'input window, operand 3, single buffered']
    #allocation6 [shape = 's32[1]{0}', space=sflag, size = 0x4, scoped, tag = 'scoped memory for tpu_custom_call.1']
    #allocation7 [shape = 'u8[65536]{0}', space=vmem, size = 0x10000, scoped, tag = 'input window, operand 4, single buffered']
    #allocation8 [shape = 'u8[32768]{0}', space=vmem, size = 0x8000, scoped, tag = 'input window, operand 5, single buffered']
    #allocation9 [shape = 's32[1]{0}', space=sflag, size = 0x4, scoped, tag = 'scoped memory for tpu_custom_call.1']
    #allocation10 [shape = 'u8[65536]{0}', space=vmem, size = 0x10000, scoped, tag = 'input window, operand 6, single buffered']
    #allocation11 [shape = 'u8[65536]{0}', space=vmem, size = 0x10000, scoped, tag = 'input window, operand 7, single buffered']
    #allocation12 [shape = 's32[1]{0}', space=sflag, size = 0x4, scoped, tag = 'scoped memory for tpu_custom_call.1']
    #allocation13 [shape = 'u8[8192]{0}', space=vmem, size = 0x2000, scoped, tag = 'output window, operand 0']
    %15 = vsyncpa [#allocation3], 0
    %s16 = scalar_lea.sflag [#allocation3], 1
    %17 = vsyncpa %s16, 0
    %18 = vsyncpa [#allocation6], 0
    %19 = vsyncpa [#allocation9], 0
    %20 = vsyncpa [#allocation12], 0
    %21 = vsyncpa [#allocation4], 0
    %s22 = scalar_lea.sflag [#allocation4], 1
    %23 = vsyncpa %s22, 0
    loop: start=0, step=1, limit=4
    $region2: #{tpu_custom_call.1} parent=1 // loop_pre_header
      _
    $region3: #{tpu_custom_call.1} parent=1 // loop_header
      %s25 = sphi 0, %s29
      %p26 = scmp.ge.s32.totalorder %s25, 4
      %s35 = sphi 0, %s37
      %s38 = sphi 0, %s35
      %s39 = sphi 0, %s38
      %s55 = sphi 0, %s39
      %s61 = sphi 0, %s63
      %s64 = sphi 0, %s61
      %s65 = sphi 0, %s64
      %s81 = sphi 0, %s65
      %s87 = sphi 0, %s89
      %s90 = sphi 0, %s87
      %s91 = sphi 0, %s90
      %s107 = sphi 0, %s91
      %s111 = sphi 0, %s111
      %s113 = sphi 0, %s111
      %s114 = sphi 0, %s113
      %s128 = sphi 0, %s114
      %s132 = sphi 0, %s132
      %s134 = sphi 0, %s132
      %s135 = sphi 0, %s134
      %s149 = sphi 0, %s135
      %s153 = sphi 0, %s153
      %s155 = sphi 0, %s153
      %s156 = sphi 0, %s155
      %s170 = sphi 0, %s156
      %s174 = sphi 0, %s174
      %s176 = sphi 0, %s174
      %s177 = sphi 0, %s176
      %s191 = sphi 0, %s177
      %s195 = sphi 0, %s195
      %s197 = sphi 0, %s195
      %s198 = sphi 0, %s197
      %s212 = sphi 0, %s198
      %s216 = sphi 0, %s216
      %s218 = sphi 0, %s216
      %s219 = sphi 0, %s218
      %s233 = sphi 0, %s219
      %s237 = sphi 0, %s237
      %s239 = sphi 0, %s237
      %s240 = sphi 0, %s239
      %s254 = sphi 0, %s240
      %s260 = sphi 0, %s262
      %s263 = sphi 0, %s260
      %s264 = sphi 0, %s263
      %s280 = sphi 0, %s264
    $region4: #{tpu_custom_call.1} parent=1 // loop_header_branch
      %28 = sbr.rel (%p26) target = $region8
    $region5: #{tpu_custom_call.1} parent=1 // loop_body
      %s30 = ssub.s32 %s25, 1
      %s31 = ssub.s32 %s25, 2
      %s32 = sadd.s32 %s25, 1
      %s33 = ssub.s32 %s25, %s32
      %p34 = scmp.eq.s32.totalorder %s33, 0
      %s36 = sadd.s32 %s35, 1
      %s37 = scalar_select %p34, %s35, %s36
      %p40 = pneg %p34
      %p41 = scmp.eq.s32.totalorder %s25, 1
      %p42 = por %p40, %p41
      %p43 = scmp.ne.s32.totalorder %s35, %s38
      %p44 = scmp.eq.s32.totalorder %s25, 0
      %p45 = por %p43, %p44
      %p46 = scmp.ne.s32.totalorder %s35, %s38
      %p47 = scmp.eq.s32.totalorder %s30, 1
      %p48 = por %p46, %p47
      %p49 = scmp.ne.s32.totalorder %s38, %s39
      %p50 = scmp.eq.s32.totalorder %s30, 0
      %p51 = por %p49, %p50
      %p52 = scmp.ne.s32.totalorder %s38, %s39
      %p53 = scmp.eq.s32.totalorder %s31, 1
      %p54 = por %p52, %p53
      %p56 = scmp.ne.s32.totalorder %s39, %s55
      %p57 = scmp.eq.s32.totalorder %s31, 0
      %p58 = por %p56, %p57
      %s59 = ssub.s32 %s25, %s32
      %p60 = scmp.eq.s32.totalorder %s59, 0
      %s62 = sadd.s32 %s61, 1
      %s63 = scalar_select %p60, %s61, %s62
      %p66 = pneg %p60
      %p67 = scmp.eq.s32.totalorder %s25, 1
      %p68 = por %p66, %p67
      %p69 = scmp.ne.s32.totalorder %s61, %s64
      %p70 = scmp.eq.s32.totalorder %s25, 0
      %p71 = por %p69, %p70
      %p72 = scmp.ne.s32.totalorder %s61, %s64
      %p73 = scmp.eq.s32.totalorder %s30, 1
      %p74 = por %p72, %p73
      %p75 = scmp.ne.s32.totalorder %s64, %s65
      %p76 = scmp.eq.s32.totalorder %s30, 0
      %p77 = por %p75, %p76
      %p78 = scmp.ne.s32.totalorder %s64, %s65
      %p79 = scmp.eq.s32.totalorder %s31, 1
      %p80 = por %p78, %p79
      %p82 = scmp.ne.s32.totalorder %s65, %s81
      %p83 = scmp.eq.s32.totalorder %s31, 0
      %p84 = por %p82, %p83
      %s85 = ssub.s32 %s25, %s32
      %p86 = scmp.eq.s32.totalorder %s85, 0
      %s88 = sadd.s32 %s87, 1
      %s89 = scalar_select %p86, %s87, %s88
      %p92 = pneg %p86
      %p93 = scmp.eq.s32.totalorder %s25, 1
      %p94 = por %p92, %p93
      %p95 = scmp.ne.s32.totalorder %s87, %s90
      %p96 = scmp.eq.s32.totalorder %s25, 0
      %p97 = por %p95, %p96
      %p98 = scmp.ne.s32.totalorder %s87, %s90
      %p99 = scmp.eq.s32.totalorder %s30, 1
      %p100 = por %p98, %p99
      %p101 = scmp.ne.s32.totalorder %s90, %s91
      %p102 = scmp.eq.s32.totalorder %s30, 0
      %p103 = por %p101, %p102
      %p104 = scmp.ne.s32.totalorder %s90, %s91
      %p105 = scmp.eq.s32.totalorder %s31, 1
      %p106 = por %p104, %p105
      %p108 = scmp.ne.s32.totalorder %s91, %s107
      %p109 = scmp.eq.s32.totalorder %s31, 0
      %p110 = por %p108, %p109
      %s112 = sadd.s32 %s111, 1
      %p115 = scmp.eq.s32.totalorder %s25, 1
      %p116 = scmp.ne.s32.totalorder %s111, %s113
      %p117 = scmp.eq.s32.totalorder %s25, 0
      %p118 = por %p116, %p117
      %p119 = scmp.ne.s32.totalorder %s111, %s113
      %p120 = scmp.eq.s32.totalorder %s30, 1
      %p121 = por %p119, %p120
      %p122 = scmp.ne.s32.totalorder %s113, %s114
      %p123 = scmp.eq.s32.totalorder %s30, 0
      %p124 = por %p122, %p123
      %p125 = scmp.ne.s32.totalorder %s113, %s114
      %p126 = scmp.eq.s32.totalorder %s31, 1
      %p127 = por %p125, %p126
      %p129 = scmp.ne.s32.totalorder %s114, %s128
      %p130 = scmp.eq.s32.totalorder %s31, 0
      %p131 = por %p129, %p130
      %s133 = sadd.s32 %s132, 1
      %p136 = scmp.eq.s32.totalorder %s25, 1
      %p137 = scmp.ne.s32.totalorder %s132, %s134
      %p138 = scmp.eq.s32.totalorder %s25, 0
      %p139 = por %p137, %p138
      %p140 = scmp.ne.s32.totalorder %s132, %s134
      %p141 = scmp.eq.s32.totalorder %s30, 1
      %p142 = por %p140, %p141
      %p143 = scmp.ne.s32.totalorder %s134, %s135
      %p144 = scmp.eq.s32.totalorder %s30, 0
      %p145 = por %p143, %p144
      %p146 = scmp.ne.s32.totalorder %s134, %s135
      %p147 = scmp.eq.s32.totalorder %s31, 1
      %p148 = por %p146, %p147
      %p150 = scmp.ne.s32.totalorder %s135, %s149
      %p151 = scmp.eq.s32.totalorder %s31, 0
      %p152 = por %p150, %p151
      %s154 = sadd.s32 %s153, 1
      %p157 = scmp.eq.s32.totalorder %s25, 1
      %p158 = scmp.ne.s32.totalorder %s153, %s155
      %p159 = scmp.eq.s32.totalorder %s25, 0
      %p160 = por %p158, %p159
      %p161 = scmp.ne.s32.totalorder %s153, %s155
      %p162 = scmp.eq.s32.totalorder %s30, 1
      %p163 = por %p161, %p162
      %p164 = scmp.ne.s32.totalorder %s155, %s156
      %p165 = scmp.eq.s32.totalorder %s30, 0
      %p166 = por %p164, %p165
      %p167 = scmp.ne.s32.totalorder %s155, %s156
      %p168 = scmp.eq.s32.totalorder %s31, 1
      %p169 = por %p167, %p168
      %p171 = scmp.ne.s32.totalorder %s156, %s170
      %p172 = scmp.eq.s32.totalorder %s31, 0
      %p173 = por %p171, %p172
      %s175 = sadd.s32 %s174, 1
      %p178 = scmp.eq.s32.totalorder %s25, 1
      %p179 = scmp.ne.s32.totalorder %s174, %s176
      %p180 = scmp.eq.s32.totalorder %s25, 0
      %p181 = por %p179, %p180
      %p182 = scmp.ne.s32.totalorder %s174, %s176
      %p183 = scmp.eq.s32.totalorder %s30, 1
      %p184 = por %p182, %p183
      %p185 = scmp.ne.s32.totalorder %s176, %s177
      %p186 = scmp.eq.s32.totalorder %s30, 0
      %p187 = por %p185, %p186
      %p188 = scmp.ne.s32.totalorder %s176, %s177
      %p189 = scmp.eq.s32.totalorder %s31, 1
      %p190 = por %p188, %p189
      %p192 = scmp.ne.s32.totalorder %s177, %s191
      %p193 = scmp.eq.s32.totalorder %s31, 0
      %p194 = por %p192, %p193
      %s196 = sadd.s32 %s195, 1
      %p199 = scmp.eq.s32.totalorder %s25, 1
      %p200 = scmp.ne.s32.totalorder %s195, %s197
      %p201 = scmp.eq.s32.totalorder %s25, 0
      %p202 = por %p200, %p201
      %p203 = scmp.ne.s32.totalorder %s195, %s197
      %p204 = scmp.eq.s32.totalorder %s30, 1
      %p205 = por %p203, %p204
      %p206 = scmp.ne.s32.totalorder %s197, %s198
      %p207 = scmp.eq.s32.totalorder %s30, 0
      %p208 = por %p206, %p207
      %p209 = scmp.ne.s32.totalorder %s197, %s198
      %p210 = scmp.eq.s32.totalorder %s31, 1
      %p211 = por %p209, %p210
      %p213 = scmp.ne.s32.totalorder %s198, %s212
      %p214 = scmp.eq.s32.totalorder %s31, 0
      %p215 = por %p213, %p214
      %s217 = sadd.s32 %s216, 1
      %p220 = scmp.eq.s32.totalorder %s25, 1
      %p221 = scmp.ne.s32.totalorder %s216, %s218
      %p222 = scmp.eq.s32.totalorder %s25, 0
      %p223 = por %p221, %p222
      %p224 = scmp.ne.s32.totalorder %s216, %s218
      %p225 = scmp.eq.s32.totalorder %s30, 1
      %p226 = por %p224, %p225
      %p227 = scmp.ne.s32.totalorder %s218, %s219
      %p228 = scmp.eq.s32.totalorder %s30, 0
      %p229 = por %p227, %p228
      %p230 = scmp.ne.s32.totalorder %s218, %s219
      %p231 = scmp.eq.s32.totalorder %s31, 1
      %p232 = por %p230, %p231
      %p234 = scmp.ne.s32.totalorder %s219, %s233
      %p235 = scmp.eq.s32.totalorder %s31, 0
      %p236 = por %p234, %p235
      %s238 = sadd.s32 %s237, 1
      %p241 = scmp.eq.s32.totalorder %s25, 1
      %p242 = scmp.ne.s32.totalorder %s237, %s239
      %p243 = scmp.eq.s32.totalorder %s25, 0
      %p244 = por %p242, %p243
      %p245 = scmp.ne.s32.totalorder %s237, %s239
      %p246 = scmp.eq.s32.totalorder %s30, 1
      %p247 = por %p245, %p246
      %p248 = scmp.ne.s32.totalorder %s239, %s240
      %p249 = scmp.eq.s32.totalorder %s30, 0
      %p250 = por %p248, %p249
      %p251 = scmp.ne.s32.totalorder %s239, %s240
      %p252 = scmp.eq.s32.totalorder %s31, 1
      %p253 = por %p251, %p252
      %p255 = scmp.ne.s32.totalorder %s240, %s254
      %p256 = scmp.eq.s32.totalorder %s31, 0
      %p257 = por %p255, %p256
      %s258 = ssub.s32 %s25, %s32
      %p259 = scmp.eq.s32.totalorder %s258, 0
      %s261 = sadd.s32 %s260, 1
      %s262 = scalar_select %p259, %s260, %s261
      %p265 = pneg %p259
      %p266 = scmp.eq.s32.totalorder %s25, 1
      %p267 = por %p265, %p266
      %p268 = scmp.ne.s32.totalorder %s260, %s263
      %p269 = scmp.eq.s32.totalorder %s25, 0
      %p270 = por %p268, %p269
      %p271 = scmp.ne.s32.totalorder %s260, %s263
      %p272 = scmp.eq.s32.totalorder %s30, 1
      %p273 = por %p271, %p272
      %p274 = scmp.ne.s32.totalorder %s263, %s264
      %p275 = scmp.eq.s32.totalorder %s30, 0
      %p276 = por %p274, %p275
      %p277 = scmp.ne.s32.totalorder %s263, %s264
      %p278 = scmp.eq.s32.totalorder %s31, 1
      %p279 = por %p277, %p278
      %p281 = scmp.ne.s32.totalorder %s264, %s280
      %p282 = scmp.eq.s32.totalorder %s31, 0
      %p283 = por %p281, %p282
      %p284 = scmp.le.s32.totalorder 1, %s25
      %p285 = scmp.lt.s32.totalorder %s25, 3
      %p286 = pnand %p284, %p285
      %p287 = pneg %p286
      // Predicated region
      $region9: #{tpu_custom_call.1} parent=5 // pred_check
        _
      $region10: #{tpu_custom_call.1} parent=5 // pred_check_branch
        %289 = sbr.rel (%p286) target = $region12
      $region11: #{tpu_custom_call.1} parent=5 // pred_region
        %s290 = ssub.s32 %s25, 1
        // Predicated region
        $region13: #{tpu_custom_call.1} parent=11 // pred_check
          %p291 = pneg %p124
        $region14: #{tpu_custom_call.1} parent=11 // pred_check_branch
          %293 = sbr.rel (%p291) target = $region16
        $region15: #{tpu_custom_call.1} parent=11 // pred_region
          %s295 = ssub.s32 1024, 1024
          %296 = vsyncadd [#allocation6], %s295
          %s297 = sshll.u32 [#allocation5], 4
          %s298 = int_to_ptr.vmem [resolvable:$true] %s297
          %303 = dma.hbm_to_vmem [thread:$0]  %s3, 1024, %s298, [#allocation6], 64, 64, 4
        $region16: #{tpu_custom_call.1} parent=11 // pred_fallthru
          _
        // Predicated region
        $region17: #{tpu_custom_call.1} parent=11 // pred_check
          %p304 = pneg %p145
        $region18: #{tpu_custom_call.1} parent=11 // pred_check_branch
          %306 = sbr.rel (%p304) target = $region20
        $region19: #{tpu_custom_call.1} parent=11 // pred_region
          %s308 = ssub.s32 2048, 2048
          %309 = vsyncadd [#allocation6], %s308
          %s310 = sshll.u32 [#allocation7], 4
          %s311 = int_to_ptr.vmem [resolvable:$true] %s310
          %316 = dma.hbm_to_vmem [thread:$0]  %s4, 2048, %s311, [#allocation6], 128, 128, 8
        $region20: #{tpu_custom_call.1} parent=11 // pred_fallthru
          _
        // Predicated region
        $region21: #{tpu_custom_call.1} parent=11 // pred_check
          %p317 = pneg %p166
        $region22: #{tpu_custom_call.1} parent=11 // pred_check_branch
          %319 = sbr.rel (%p317) target = $region24
        $region23: #{tpu_custom_call.1} parent=11 // pred_region
          %s321 = ssub.s32 1024, 1024
          %322 = vsyncadd [#allocation9], %s321
          %s323 = sshll.u32 [#allocation8], 4
          %s324 = int_to_ptr.vmem [resolvable:$true] %s323
          %329 = dma.hbm_to_vmem [thread:$0]  %s5, 1024, %s324, [#allocation9], 64, 64, 4
        $region24: #{tpu_custom_call.1} parent=11 // pred_fallthru
          _
        // Predicated region
        $region25: #{tpu_custom_call.1} parent=11 // pred_check
          %p330 = pneg %p187
        $region26: #{tpu_custom_call.1} parent=11 // pred_check_branch
          %332 = sbr.rel (%p330) target = $region28
        $region27: #{tpu_custom_call.1} parent=11 // pred_region
          %s334 = ssub.s32 2048, 2048
          %335 = vsyncadd [#allocation9], %s334
          %s336 = sshll.u32 [#allocation10], 4
          %s337 = int_to_ptr.vmem [resolvable:$true] %s336
          %342 = dma.hbm_to_vmem [thread:$0]  %s6, 2048, %s337, [#allocation9], 128, 128, 8
        $region28: #{tpu_custom_call.1} parent=11 // pred_fallthru
          _
        // Predicated region
        $region29: #{tpu_custom_call.1} parent=11 // pred_check
          %p343 = pneg %p208
        $region30: #{tpu_custom_call.1} parent=11 // pred_check_branch
          %345 = sbr.rel (%p343) target = $region32
        $region31: #{tpu_custom_call.1} parent=11 // pred_region
          %s347 = ssub.s32 2048, 2048
          %348 = vsyncadd [#allocation12], %s347
          %s349 = sshll.u32 [#allocation11], 4
          %s350 = int_to_ptr.vmem [resolvable:$true] %s349
          %355 = dma.hbm_to_vmem [thread:$0]  %s7, 2048, %s350, [#allocation12], 64, 64, 4
        $region32: #{tpu_custom_call.1} parent=11 // pred_fallthru
          _
        // Predicated region
        $region33: #{tpu_custom_call.1} parent=11 // pred_check
          %p356 = pneg %p229
        $region34: #{tpu_custom_call.1} parent=11 // pred_check_branch
          %358 = sbr.rel (%p356) target = $region36
        $region35: #{tpu_custom_call.1} parent=11 // pred_region
          _
        $region36: #{tpu_custom_call.1} parent=11 // pred_fallthru
          _
        // Predicated region
        $region37: #{tpu_custom_call.1} parent=11 // pred_check
          %p359 = pneg %p250
        $region38: #{tpu_custom_call.1} parent=11 // pred_check_branch
          %361 = sbr.rel (%p359) target = $region40
        $region39: #{tpu_custom_call.1} parent=11 // pred_region
          _
        $region40: #{tpu_custom_call.1} parent=11 // pred_fallthru
          _
      $region12: #{tpu_custom_call.1} parent=5 // pred_fallthru
        _
      %p362 = scmp.lt.s32.totalorder %s25, 2
      // Predicated region
      $region41: #{tpu_custom_call.1} parent=5 // pred_check
        %p363 = pneg %p362
      $region42: #{tpu_custom_call.1} parent=5 // pred_check_branch
        %365 = sbr.rel (%p363) target = $region44
      $region43: #{tpu_custom_call.1} parent=5 // pred_region
        // Predicated region
        $region45: #{tpu_custom_call.1} parent=43 // pred_check
          %p366 = pneg %p45
        $region46: #{tpu_custom_call.1} parent=43 // pred_check_branch
          %368 = sbr.rel (%p366) target = $region48
        $region47: #{tpu_custom_call.1} parent=43 // pred_region
          %p369 = scmp.lt.s32.totalorder %s25, 1
          %s370 = scalar_select %p369, %s25, 1
          %s371 = smul.addr %s370, 8
          %s372 = scalar_lea.vmem %s0, %s371
        $region48: #{tpu_custom_call.1} parent=43 // pred_fallthru
          _
        // Predicated region
        $region49: #{tpu_custom_call.1} parent=43 // pred_check
          %p373 = pneg %p71
        $region50: #{tpu_custom_call.1} parent=43 // pred_check_branch
          %375 = sbr.rel (%p373) target = $region52
        $region51: #{tpu_custom_call.1} parent=43 // pred_region
          %s376 = sand.u32 %s61, 1
          %s377 = scalar_lea.sflag [#allocation3], %s376
          %s378 = sand.u32 %s61, 1
          %s379 = smul.addr %s378, 64
          %s380 = scalar_lea.vmem [#allocation2], %s379
          %s381 = smul.u32 8, %s25
          %s383 = ssub.s32 1024, 1024
          %384 = vsyncadd %s377, %s383
          %s385 = smul.addr %s381, 2
          %s386 = smul.addr %s385, 64
          %s387 = scalar_lea.hbm %s1, %s386
          %s388 = sshll.u32 %s380, 4
          %s389 = int_to_ptr.vmem [resolvable:$true] %s388
          %394 = dma.hbm_to_vmem [thread:$0]  %s387, 1024, %s389, %s377, 64, 64, 4
        $region52: #{tpu_custom_call.1} parent=43 // pred_fallthru
          _
        // Predicated region
        $region53: #{tpu_custom_call.1} parent=43 // pred_check
          %p395 = pneg %p97
        $region54: #{tpu_custom_call.1} parent=43 // pred_check_branch
          %397 = sbr.rel (%p395) target = $region56
        $region55: #{tpu_custom_call.1} parent=43 // pred_region
          %p398 = scmp.lt.s32.totalorder %s25, 1
          %s399 = scalar_select %p398, %s25, 1
          %s400 = smul.addr %s399, 8
          %s401 = scalar_lea.vmem %s2, %s400
        $region56: #{tpu_custom_call.1} parent=43 // pred_fallthru
          _
      $region44: #{tpu_custom_call.1} parent=5 // pred_fallthru
        _
      %p402 = scmp.le.s32.totalorder 1, %s25
      %p403 = scmp.lt.s32.totalorder %s25, 3
      %p404 = pnand %p402, %p403
      %p405 = pneg %p404
      // Predicated region
      $region57: #{tpu_custom_call.1} parent=5 // pred_check
        _
      $region58: #{tpu_custom_call.1} parent=5 // pred_check_branch
        %407 = sbr.rel (%p404) target = $region60
      $region59: #{tpu_custom_call.1} parent=5 // pred_region
        %s408 = ssub.s32 %s25, 1
        %s409 = sand.u32 %s64, 1
        %s410 = scalar_lea.sflag [#allocation3], %s409
        %s411 = sand.u32 %s64, 1
        %s412 = smul.addr %s411, 64
        %s413 = scalar_lea.vmem [#allocation2], %s412
        // Predicated region
        $region61: #{tpu_custom_call.1} parent=59 // pred_check
          %p414 = pneg %p77
        $region62: #{tpu_custom_call.1} parent=59 // pred_check_branch
          %416 = sbr.rel (%p414) target = $region64
        $region63: #{tpu_custom_call.1} parent=59 // pred_region
          %417 = dma.done %s410, 1024
        $region64: #{tpu_custom_call.1} parent=59 // pred_fallthru
          _
        // Predicated region
        $region65: #{tpu_custom_call.1} parent=59 // pred_check
          %p418 = pneg %p124
        $region66: #{tpu_custom_call.1} parent=59 // pred_check_branch
          %420 = sbr.rel (%p418) target = $region68
        $region67: #{tpu_custom_call.1} parent=59 // pred_region
          %421 = dma.done [#allocation6], 1024
        $region68: #{tpu_custom_call.1} parent=59 // pred_fallthru
          _
        // Predicated region
        $region69: #{tpu_custom_call.1} parent=59 // pred_check
          %p422 = pneg %p145
        $region70: #{tpu_custom_call.1} parent=59 // pred_check_branch
          %424 = sbr.rel (%p422) target = $region72
        $region71: #{tpu_custom_call.1} parent=59 // pred_region
          %425 = dma.done [#allocation6], 2048
        $region72: #{tpu_custom_call.1} parent=59 // pred_fallthru
          _
        // Predicated region
        $region73: #{tpu_custom_call.1} parent=59 // pred_check
          %p426 = pneg %p166
        $region74: #{tpu_custom_call.1} parent=59 // pred_check_branch
          %428 = sbr.rel (%p426) target = $region76
        $region75: #{tpu_custom_call.1} parent=59 // pred_region
          %429 = dma.done [#allocation9], 1024
        $region76: #{tpu_custom_call.1} parent=59 // pred_fallthru
          _
        // Predicated region
        $region77: #{tpu_custom_call.1} parent=59 // pred_check
          %p430 = pneg %p187
        $region78: #{tpu_custom_call.1} parent=59 // pred_check_branch
          %432 = sbr.rel (%p430) target = $region80
        $region79: #{tpu_custom_call.1} parent=59 // pred_region
          %433 = dma.done [#allocation9], 2048
        $region80: #{tpu_custom_call.1} parent=59 // pred_fallthru
          _
        // Predicated region
        $region81: #{tpu_custom_call.1} parent=59 // pred_check
          %p434 = pneg %p208
        $region82: #{tpu_custom_call.1} parent=59 // pred_check_branch
          %436 = sbr.rel (%p434) target = $region84
        $region83: #{tpu_custom_call.1} parent=59 // pred_region
          %437 = dma.done [#allocation12], 2048
        $region84: #{tpu_custom_call.1} parent=59 // pred_fallthru
          _
        %p438 = scmp.lt.s32.totalorder %s30, 1
        %s439 = scalar_select %p438, %s30, 1
        %s440 = smul.addr %s439, 8
        %s441 = scalar_lea.vmem %s0, %s440
        %p442 = pneg %p51
        %p443 = pneg %p48
        %s444 = sand.u32 %s64, 1
        %s445 = scalar_lea.sflag [#allocation3], %s444
        %s446 = sand.u32 %s64, 1
        %s447 = smul.addr %s446, 64
        %s448 = scalar_lea.vmem [#allocation2], %s447
        %p449 = pneg %p77
        %p450 = pneg %p74
        %p451 = scmp.lt.s32.totalorder %s30, 1
        %s452 = scalar_select %p451, %s30, 1
        %s453 = smul.addr %s452, 8
        %s454 = scalar_lea.vmem %s2, %s453
        %p455 = pneg %p103
        %p456 = pneg %p100
        %p457 = pneg %p124
        %p458 = pneg %p121
        %p459 = pneg %p145
        %p460 = pneg %p142
        %p461 = pneg %p166
        %p462 = pneg %p163
        %p463 = pneg %p187
        %p464 = pneg %p184
        %p465 = pneg %p208
        %p466 = pneg %p205
        %p467 = pneg %p229
        %p468 = pneg %p226
        %p469 = pneg %p250
        %p470 = pneg %p247
        %p471 = pneg %p276
        %p472 = pneg %p273
        %s473 = sand.u32 %s263, 1
        %s474 = scalar_lea.sflag [#allocation4], %s473
        %s475 = sand.u32 %s263, 1
        %s476 = smul.addr %s475, 8
        %s477 = scalar_lea.vmem [#allocation13], %s476
        %p478 = scmp.lt.s32.totalorder %s30, 1
        %s479 = scalar_select %p478, %s30, 1
        %s480 = smul.addr %s479, 8
        %s481 = scalar_lea.vmem %s0, %s480
        %s482 = smul.u32 8, %s30
        %p483 = scmp.lt.s32.totalorder %s30, 1
        %s484 = scalar_select %p483, %s30, 1
        %s485 = smul.addr %s484, 8
        %s486 = scalar_lea.vmem %s2, %s485
        %v488 = vld [vmem:[%s8] sm:$0x1]
        %v489 = vld [vmem:[%s8 + $0x1] sm:$0x1]
        %v490 = vld [vmem:[%s8 + $0x2] sm:$0x1]
        %v491 = vld [vmem:[%s8 + $0x3] sm:$0x1]
        %v492 = vld [vmem:[%s9] sm:$0x3]
        %v493 = vld [vmem:[%s9 + $0x2] sm:$0x1]
        %v494 = vld [vmem:[%s413] sm:$0xf]
        %v495 = vld [vmem:[%s413 + $0x4] sm:$0xf]
        %v496 = vld [vmem:[%s413 + $0x8] sm:$0xf]
        %v497 = vld [vmem:[%s413 + $0xc] sm:$0xf]
        %v498 = vld [vmem:[%s413 + $0x10] sm:$0xf]
        %v499 = vld [vmem:[%s413 + $0x14] sm:$0xf]
        %v500 = vld [vmem:[%s413 + $0x18] sm:$0xf]
        %v501 = vld [vmem:[%s413 + $0x1c] sm:$0xf]
        %v502 = vld [vmem:[%s413 + $0x20] sm:$0xf]
        %v503 = vld [vmem:[%s413 + $0x24] sm:$0xf]
        %v504 = vld [vmem:[%s413 + $0x28] sm:$0xf]
        %v505 = vld [vmem:[%s413 + $0x2c] sm:$0xf]
        %v506 = vld [vmem:[%s413 + $0x30] sm:$0xf]
        %v507 = vld [vmem:[%s413 + $0x34] sm:$0xf]
        %v508 = vld [vmem:[%s413 + $0x38] sm:$0xf]
        %v509 = vld [vmem:[%s413 + $0x3c] sm:$0xf]
        %v510 = vunpack.c.l.bf16 %v494
        %v511 = vunpack.c.l.bf16 %v495
        %v512 = vunpack.c.l.bf16 %v496
        %v513 = vunpack.c.l.bf16 %v497
        %v514 = vunpack.c.l.bf16 %v498
        %v515 = vunpack.c.l.bf16 %v499
        %v516 = vunpack.c.l.bf16 %v500
        %v517 = vunpack.c.l.bf16 %v501
        %v518 = vunpack.c.l.bf16 %v502
        %v519 = vunpack.c.l.bf16 %v503
        %v520 = vunpack.c.l.bf16 %v504
        %v521 = vunpack.c.l.bf16 %v505
        %v522 = vunpack.c.l.bf16 %v506
        %v523 = vunpack.c.l.bf16 %v507
        %v524 = vunpack.c.l.bf16 %v508
        %v525 = vunpack.c.l.bf16 %v509
        %526 = vadd.xlane.f32.xlu0 %v510
        %v527 = vpop.xlane.xlu0 %526
        %528 = vadd.xlane.f32.xlu0 %v511
        %v529 = vpop.xlane.xlu0 %528
        %530 = vadd.xlane.f32.xlu0 %v512
        %v531 = vpop.xlane.xlu0 %530
        %532 = vadd.xlane.f32.xlu0 %v513
        %v533 = vpop.xlane.xlu0 %532
        %534 = vadd.xlane.f32.xlu0 %v514
        %v535 = vpop.xlane.xlu0 %534
        %536 = vadd.xlane.f32.xlu0 %v515
        %v537 = vpop.xlane.xlu0 %536
        %538 = vadd.xlane.f32.xlu0 %v516
        %v539 = vpop.xlane.xlu0 %538
        %540 = vadd.xlane.f32.xlu0 %v517
        %v541 = vpop.xlane.xlu0 %540
        %542 = vadd.xlane.f32.xlu0 %v518
        %v543 = vpop.xlane.xlu0 %542
        %544 = vadd.xlane.f32.xlu0 %v519
        %v545 = vpop.xlane.xlu0 %544
        %546 = vadd.xlane.f32.xlu0 %v520
        %v547 = vpop.xlane.xlu0 %546
        %548 = vadd.xlane.f32.xlu0 %v521
        %v549 = vpop.xlane.xlu0 %548
        %550 = vadd.xlane.f32.xlu0 %v522
        %v551 = vpop.xlane.xlu0 %550
        %552 = vadd.xlane.f32.xlu0 %v523
        %v553 = vpop.xlane.xlu0 %552
        %554 = vadd.xlane.f32.xlu0 %v524
        %v555 = vpop.xlane.xlu0 %554
        %556 = vadd.xlane.f32.xlu0 %v525
        %v557 = vpop.xlane.xlu0 %556
        %v558 = vrcp.pop 128.0
        %v559 = vmul.f32 %v527, %v558
        %v560 = vmul.f32 %v529, %v558
        %v561 = vmul.f32 %v531, %v558
        %v562 = vmul.f32 %v533, %v558
        %v563 = vmul.f32 %v535, %v558
        %v564 = vmul.f32 %v537, %v558
        %v565 = vmul.f32 %v539, %v558
        %v566 = vmul.f32 %v541, %v558
        %v567 = vmul.f32 %v543, %v558
        %v568 = vmul.f32 %v545, %v558
        %v569 = vmul.f32 %v547, %v558
        %v570 = vmul.f32 %v549, %v558
        %v571 = vmul.f32 %v551, %v558
        %v572 = vmul.f32 %v553, %v558
        %v573 = vmul.f32 %v555, %v558
        %v574 = vmul.f32 %v557, %v558
        %v575 = vsub.f32 %v510, %v559
        %v576 = vsub.f32 %v511, %v560
        %v577 = vsub.f32 %v512, %v561
        %v578 = vsub.f32 %v513, %v562
        %v579 = vsub.f32 %v514, %v563
        %v580 = vsub.f32 %v515, %v564
        %v581 = vsub.f32 %v516, %v565
        %v582 = vsub.f32 %v517, %v566
        %v583 = vsub.f32 %v518, %v567
        %v584 = vsub.f32 %v519, %v568
        %v585 = vsub.f32 %v520, %v569
        %v586 = vsub.f32 %v521, %v570
        %v587 = vsub.f32 %v522, %v571
        %v588 = vsub.f32 %v523, %v572
        %v589 = vsub.f32 %v524, %v573
        %v590 = vsub.f32 %v525, %v574
        %v591 = vmul.f32 %v575, %v575
        %v592 = vmul.f32 %v576, %v576
        %v593 = vmul.f32 %v577, %v577
        %v594 = vmul.f32 %v578, %v578
        %v595 = vmul.f32 %v579, %v579
        %v596 = vmul.f32 %v580, %v580
        %v597 = vmul.f32 %v581, %v581
        %v598 = vmul.f32 %v582, %v582
        %v599 = vmul.f32 %v583, %v583
        %v600 = vmul.f32 %v584, %v584
        %v601 = vmul.f32 %v585, %v585
        %v602 = vmul.f32 %v586, %v586
        %v603 = vmul.f32 %v587, %v587
        %v604 = vmul.f32 %v588, %v588
        %v605 = vmul.f32 %v589, %v589
        %v606 = vmul.f32 %v590, %v590
        %607 = vadd.xlane.f32.xlu0 %v591
        %v608 = vpop.xlane.xlu0 %607
        %609 = vadd.xlane.f32.xlu0 %v592
        %v610 = vpop.xlane.xlu0 %609
        %611 = vadd.xlane.f32.xlu0 %v593
        %v612 = vpop.xlane.xlu0 %611
        %613 = vadd.xlane.f32.xlu0 %v594
        %v614 = vpop.xlane.xlu0 %613
        %615 = vadd.xlane.f32.xlu0 %v595
        %v616 = vpop.xlane.xlu0 %615
        %617 = vadd.xlane.f32.xlu0 %v596
        %v618 = vpop.xlane.xlu0 %617
        %619 = vadd.xlane.f32.xlu0 %v597
        %v620 = vpop.xlane.xlu0 %619
        %621 = vadd.xlane.f32.xlu0 %v598
        %v622 = vpop.xlane.xlu0 %621
        %623 = vadd.xlane.f32.xlu0 %v599
        %v624 = vpop.xlane.xlu0 %623
        %625 = vadd.xlane.f32.xlu0 %v600
        %v626 = vpop.xlane.xlu0 %625
        %627 = vadd.xlane.f32.xlu0 %v601
        %v628 = vpop.xlane.xlu0 %627
        %629 = vadd.xlane.f32.xlu0 %v602
        %v630 = vpop.xlane.xlu0 %629
        %631 = vadd.xlane.f32.xlu0 %v603
        %v632 = vpop.xlane.xlu0 %631
        %633 = vadd.xlane.f32.xlu0 %v604
        %v634 = vpop.xlane.xlu0 %633
        %635 = vadd.xlane.f32.xlu0 %v605
        %v636 = vpop.xlane.xlu0 %635
        %637 = vadd.xlane.f32.xlu0 %v606
        %v638 = vpop.xlane.xlu0 %637
        %v639 = vmul.f32 %v608, %v558
        %v640 = vmul.f32 %v610, %v558
        %v641 = vmul.f32 %v612, %v558
        %v642 = vmul.f32 %v614, %v558
        %v643 = vmul.f32 %v616, %v558
        %v644 = vmul.f32 %v618, %v558
        %v645 = vmul.f32 %v620, %v558
        %v646 = vmul.f32 %v622, %v558
        %v647 = vmul.f32 %v624, %v558
        %v648 = vmul.f32 %v626, %v558
        %v649 = vmul.f32 %v628, %v558
        %v650 = vmul.f32 %v630, %v558
        %v651 = vmul.f32 %v632, %v558
        %v652 = vmul.f32 %v634, %v558
        %v653 = vmul.f32 %v636, %v558
        %v654 = vmul.f32 %v638, %v558
        %v655 = vadd.f32 %v639, 1e-05
        %v656 = vadd.f32 %v640, 1e-05
        %v657 = vadd.f32 %v641, 1e-05
        %v658 = vadd.f32 %v642, 1e-05
        %v659 = vadd.f32 %v643, 1e-05
        %v660 = vadd.f32 %v644, 1e-05
        %v661 = vadd.f32 %v645, 1e-05
        %v662 = vadd.f32 %v646, 1e-05
        %v663 = vadd.f32 %v647, 1e-05
        %v664 = vadd.f32 %v648, 1e-05
        %v665 = vadd.f32 %v649, 1e-05
        %v666 = vadd.f32 %v650, 1e-05
        %v667 = vadd.f32 %v651, 1e-05
        %v668 = vadd.f32 %v652, 1e-05
        %v669 = vadd.f32 %v653, 1e-05
        %v670 = vadd.f32 %v654, 1e-05
        %v671 = vrsqrt.pop %v655
        %v672 = vrsqrt.pop %v656
        %v673 = vrsqrt.pop %v657
        %v674 = vrsqrt.pop %v658
        %v675 = vrsqrt.pop %v659
        %v676 = vrsqrt.pop %v660
        %v677 = vrsqrt.pop %v661
        %v678 = vrsqrt.pop %v662
        %v679 = vrsqrt.pop %v663
        %v680 = vrsqrt.pop %v664
        %v681 = vrsqrt.pop %v665
        %v682 = vrsqrt.pop %v666
        %v683 = vrsqrt.pop %v667
        %v684 = vrsqrt.pop %v668
        %v685 = vrsqrt.pop %v669
        %v686 = vrsqrt.pop %v670
        %v687 = vmul.f32 %v575, %v671
        %v688 = vmul.f32 %v576, %v672
        %v689 = vmul.f32 %v577, %v673
        %v690 = vmul.f32 %v578, %v674
        %v691 = vmul.f32 %v579, %v675
        %v692 = vmul.f32 %v580, %v676
        %v693 = vmul.f32 %v581, %v677
        %v694 = vmul.f32 %v582, %v678
        %v695 = vmul.f32 %v583, %v679
        %v696 = vmul.f32 %v584, %v680
        %v697 = vmul.f32 %v585, %v681
        %v698 = vmul.f32 %v586, %v682
        %v699 = vmul.f32 %v587, %v683
        %v700 = vmul.f32 %v588, %v684
        %v701 = vmul.f32 %v589, %v685
        %v702 = vmul.f32 %v590, %v686
        %v703 = vlaneseq
        %v704 = vshrl.u32 %v703, 7
        %v705 = vsub.s32 0, %v704
        %v706 = vrot.slane %v488, %v705
        %v707 = vmul.f32 %v687, %v706
        %v708 = vmul.f32 %v688, %v706
        %v709 = vmul.f32 %v689, %v706
        %v710 = vmul.f32 %v690, %v706
        %v711 = vmul.f32 %v691, %v706
        %v712 = vmul.f32 %v692, %v706
        %v713 = vmul.f32 %v693, %v706
        %v714 = vmul.f32 %v694, %v706
        %v715 = vmul.f32 %v695, %v706
        %v716 = vmul.f32 %v696, %v706
        %v717 = vmul.f32 %v697, %v706
        %v718 = vmul.f32 %v698, %v706
        %v719 = vmul.f32 %v699, %v706
        %v720 = vmul.f32 %v700, %v706
        %v721 = vmul.f32 %v701, %v706
        %v722 = vmul.f32 %v702, %v706
        %v723 = vlaneseq
        %v724 = vshrl.u32 %v723, 7
        %v725 = vsub.s32 0, %v724
        %v726 = vrot.slane %v489, %v725
        %v727 = vadd.f32 %v707, %v726
        %v728 = vadd.f32 %v708, %v726
        %v729 = vadd.f32 %v709, %v726
        %v730 = vadd.f32 %v710, %v726
        %v731 = vadd.f32 %v711, %v726
        %v732 = vadd.f32 %v712, %v726
        %v733 = vadd.f32 %v713, %v726
        %v734 = vadd.f32 %v714, %v726
        %v735 = vadd.f32 %v715, %v726
        %v736 = vadd.f32 %v716, %v726
        %v737 = vadd.f32 %v717, %v726
        %v738 = vadd.f32 %v718, %v726
        %v739 = vadd.f32 %v719, %v726
        %v740 = vadd.f32 %v720, %v726
        %v741 = vadd.f32 %v721, %v726
        %v742 = vadd.f32 %v722, %v726
        %v743 = vpack.c.bf16 %v728, %v727
        %v744 = vpack.c.bf16 %v730, %v729
        %v745 = vpack.c.bf16 %v732, %v731
        %v746 = vpack.c.bf16 %v734, %v733
        %v747 = vpack.c.bf16 %v736, %v735
        %v748 = vpack.c.bf16 %v738, %v737
        %v749 = vpack.c.bf16 %v740, %v739
        %v750 = vpack.c.bf16 %v742, %v741
        %v751 = vld [vmem:[#allocation7] sm:$0xff]
        %v752 = vld [vmem:[#allocation7 + $0x8] sm:$0xff]
        %v753 = vld [vmem:[#allocation7 + $0x10] sm:$0xff]
        %v754 = vld [vmem:[#allocation7 + $0x18] sm:$0xff]
        %v755 = vld [vmem:[#allocation7 + $0x20] sm:$0xff]
        %v756 = vld [vmem:[#allocation7 + $0x28] sm:$0xff]
        %v757 = vld [vmem:[#allocation7 + $0x30] sm:$0xff]
        %v758 = vld [vmem:[#allocation7 + $0x38] sm:$0xff]
        %v759 = vld [vmem:[#allocation7 + $0x40] sm:$0xff]
        %v760 = vld [vmem:[#allocation7 + $0x48] sm:$0xff]
        %v761 = vld [vmem:[#allocation7 + $0x50] sm:$0xff]
        %v762 = vld [vmem:[#allocation7 + $0x58] sm:$0xff]
        %v763 = vld [vmem:[#allocation7 + $0x60] sm:$0xff]
        %v764 = vld [vmem:[#allocation7 + $0x68] sm:$0xff]
        %v765 = vld [vmem:[#allocation7 + $0x70] sm:$0xff]
        %v766 = vld [vmem:[#allocation7 + $0x78] sm:$0xff]
        %v783 = vunpack.c.l.b16 %v751
        %v784 = vunpack.c.h.b16 %v751
        %v785 = vunpack.c.l.b16 %v752
        %v786 = vunpack.c.h.b16 %v752
        %v787 = vunpack.c.l.b16 %v753
        %v788 = vunpack.c.h.b16 %v753
        %v789 = vunpack.c.l.b16 %v754
        %v790 = vunpack.c.h.b16 %v754
        %v791 = vunpack.c.l.b16 %v755
        %v792 = vunpack.c.h.b16 %v755
        %v793 = vunpack.c.l.b16 %v756
        %v794 = vunpack.c.h.b16 %v756
        %v795 = vunpack.c.l.b16 %v757
        %v796 = vunpack.c.h.b16 %v757
        %v797 = vunpack.c.l.b16 %v758
        %v798 = vunpack.c.h.b16 %v758
        %v799 = vunpack.c.l.b16 %v759
        %v800 = vunpack.c.h.b16 %v759
        %v801 = vunpack.c.l.b16 %v760
        %v802 = vunpack.c.h.b16 %v760
        %v803 = vunpack.c.l.b16 %v761
        %v804 = vunpack.c.h.b16 %v761
        %v805 = vunpack.c.l.b16 %v762
        %v806 = vunpack.c.h.b16 %v762
        %v807 = vunpack.c.l.b16 %v763
        %v808 = vunpack.c.h.b16 %v763
        %v809 = vunpack.c.l.b16 %v764
        %v810 = vunpack.c.h.b16 %v764
        %v811 = vunpack.c.l.b16 %v765
        %v812 = vunpack.c.h.b16 %v765
        %v813 = vunpack.c.l.b16 %v766
        %v814 = vunpack.c.h.b16 %v766
        %v815 = vpack.c.b16 %v785, %v783
        %v816 = vpack.c.b16 %v786, %v784
        %v817 = vpack.c.b16 %v789, %v787
        %v818 = vpack.c.b16 %v790, %v788
        %v819 = vpack.c.b16 %v793, %v791
        %v820 = vpack.c.b16 %v794, %v792
        %v821 = vpack.c.b16 %v797, %v795
        %v822 = vpack.c.b16 %v798, %v796
        %v823 = vpack.c.b16 %v801, %v799
        %v824 = vpack.c.b16 %v802, %v800
        %v825 = vpack.c.b16 %v805, %v803
        %v826 = vpack.c.b16 %v806, %v804
        %v827 = vpack.c.b16 %v809, %v807
        %v828 = vpack.c.b16 %v810, %v808
        %v829 = vpack.c.b16 %v813, %v811
        %v830 = vpack.c.b16 %v814, %v812
        %847 = vmatprep.subr.bf16.mxu0 %v830
        %848 = vmatpush1.bf16.msra.mxu0 %v829
        %849 = vmatprep.subr.bf16.mxu0 %v828
        %850 = vmatpush1.bf16.msra.mxu0 %v827
        %851 = vmatprep.subr.bf16.mxu0 %v826
        %852 = vmatpush1.bf16.msra.mxu0 %v825
        %853 = vmatprep.subr.bf16.mxu0 %v824
        %854 = vmatpush1.bf16.msra.mxu0 %v823
        %855 = vmatprep.subr.bf16.mxu0 %v822
        %856 = vmatpush1.bf16.msra.mxu0 %v821
        %857 = vmatprep.subr.bf16.mxu0 %v820
        %858 = vmatpush1.bf16.msra.mxu0 %v819
        %859 = vmatprep.subr.bf16.mxu0 %v818
        %860 = vmatpush1.bf16.msra.mxu0 %v817
        %861 = vmatprep.subr.bf16.mxu0 %v816
        %862 = vmatpush1.bf16.msra.mxu0 %v815
        %863 = vmatprep.subr.bf16.mxu0 0
        %864 = vmatpush2.bf16.msra.mxu0 0
        %865 = vmatprep.subr.bf16.mxu0 0
        %866 = vmatpush2.bf16.msra.mxu0 0
        %867 = vmatprep.subr.bf16.mxu0 0
        %868 = vmatpush2.bf16.msra.mxu0 0
        %869 = vmatprep.subr.bf16.mxu0 0
        %870 = vmatpush2.bf16.msra.mxu0 0
        %871 = vmatprep.subr.bf16.mxu0 0
        %872 = vmatpush2.bf16.msra.mxu0 0
        %873 = vmatprep.subr.bf16.mxu0 0
        %874 = vmatpush2.bf16.msra.mxu0 0
        %875 = vmatprep.subr.bf16.mxu0 0
        %876 = vmatpush2.bf16.msra.mxu0 0
        %877 = vmatprep.subr.bf16.mxu0 0
        %878 = vmatpush2.bf16.msra.mxu0 0
        %879 = vmatprep.mubr.bf16.mxu0 0
        %880 = vmatmul.mubr.bf16.gmra.mxu0 %v743
        %v881 = vpop.f32.mrf.mxu0
        %v882 = vadd.f32 0.0, %v881
        %v883 = vpop.f32.mrf.mxu0
        %v884 = vadd.f32 0.0, %v883
        %v885 = vpop.f32.mrf.mxu0
        %v886 = vadd.f32 0.0, %v885
        %v887 = vpop.f32.mrf.mxu0
        %v888 = vadd.f32 0.0, %v887
        %889 = vmatprep.mubr.bf16.mxu0 0
        %890 = vmatmul.mubr.bf16.gmra.mxu0 %v744
        %v891 = vpop.f32.mrf.mxu0
        %v892 = vadd.f32 0.0, %v891
        %v893 = vpop.f32.mrf.mxu0
        %v894 = vadd.f32 0.0, %v893
        %v895 = vpop.f32.mrf.mxu0
        %v896 = vadd.f32 0.0, %v895
        %v897 = vpop.f32.mrf.mxu0
        %v898 = vadd.f32 0.0, %v897
        %899 = vmatprep.mubr.bf16.mxu0 0
        %900 = vmatmul.mubr.bf16.gmra.mxu0 %v745
        %v901 = vpop.f32.mrf.mxu0
        %v902 = vadd.f32 0.0, %v901
        %v903 = vpop.f32.mrf.mxu0
        %v904 = vadd.f32 0.0, %v903
        %v905 = vpop.f32.mrf.mxu0
        %v906 = vadd.f32 0.0, %v905
        %v907 = vpop.f32.mrf.mxu0
        %v908 = vadd.f32 0.0, %v907
        %909 = vmatprep.mubr.bf16.mxu0 0
        %910 = vmatmul.mubr.bf16.gmra.mxu0 %v746
        %v911 = vpop.f32.mrf.mxu0
        %v912 = vadd.f32 0.0, %v911
        %v913 = vpop.f32.mrf.mxu0
        %v914 = vadd.f32 0.0, %v913
        %v915 = vpop.f32.mrf.mxu0
        %v916 = vadd.f32 0.0, %v915
        %v917 = vpop.f32.mrf.mxu0
        %v918 = vadd.f32 0.0, %v917
        %919 = vmatprep.mubr.bf16.mxu0 0
        %920 = vmatmul.mubr.bf16.gmra.mxu0 %v747
        %v921 = vpop.f32.mrf.mxu0
        %v922 = vadd.f32 0.0, %v921
        %v923 = vpop.f32.mrf.mxu0
        %v924 = vadd.f32 0.0, %v923
        %v925 = vpop.f32.mrf.mxu0
        %v926 = vadd.f32 0.0, %v925
        %v927 = vpop.f32.mrf.mxu0
        %v928 = vadd.f32 0.0, %v927
        %929 = vmatprep.mubr.bf16.mxu0 0
        %930 = vmatmul.mubr.bf16.gmra.mxu0 %v748
        %v931 = vpop.f32.mrf.mxu0
        %v932 = vadd.f32 0.0, %v931
        %v933 = vpop.f32.mrf.mxu0
        %v934 = vadd.f32 0.0, %v933
        %v935 = vpop.f32.mrf.mxu0
        %v936 = vadd.f32 0.0, %v935
        %v937 = vpop.f32.mrf.mxu0
        %v938 = vadd.f32 0.0, %v937
        %939 = vmatprep.mubr.bf16.mxu0 0
        %940 = vmatmul.mubr.bf16.gmra.mxu0 %v749
        %v941 = vpop.f32.mrf.mxu0
        %v942 = vadd.f32 0.0, %v941
        %v943 = vpop.f32.mrf.mxu0
        %v944 = vadd.f32 0.0, %v943
        %v945 = vpop.f32.mrf.mxu0
        %v946 = vadd.f32 0.0, %v945
        %v947 = vpop.f32.mrf.mxu0
        %v948 = vadd.f32 0.0, %v947
        %949 = vmatprep.mubr.bf16.mxu0 0
        %950 = vmatmul.mubr.bf16.gmra.mxu0 %v750
        %v951 = vpop.f32.mrf.mxu0
        %v952 = vadd.f32 0.0, %v951
        %v953 = vpop.f32.mrf.mxu0
        %v954 = vadd.f32 0.0, %v953
        %v955 = vpop.f32.mrf.mxu0
        %v956 = vadd.f32 0.0, %v955
        %v957 = vpop.f32.mrf.mxu0
        %v958 = vadd.f32 0.0, %v957
        %959 = vdwg.mxu0
        %v960 = vpack.c.bf16 %v886, %v882
        %v961 = vpack.c.bf16 %v896, %v892
        %v962 = vpack.c.bf16 %v906, %v902
        %v963 = vpack.c.bf16 %v916, %v912
        %v964 = vpack.c.bf16 %v926, %v922
        %v965 = vpack.c.bf16 %v936, %v932
        %v966 = vpack.c.bf16 %v946, %v942
        %v967 = vpack.c.bf16 %v956, %v952
        %v968 = vpack.c.bf16 %v888, %v884
        %v969 = vpack.c.bf16 %v898, %v894
        %v970 = vpack.c.bf16 %v908, %v904
        %v971 = vpack.c.bf16 %v918, %v914
        %v972 = vpack.c.bf16 %v928, %v924
        %v973 = vpack.c.bf16 %v938, %v934
        %v974 = vpack.c.bf16 %v948, %v944
        %v975 = vpack.c.bf16 %v958, %v954
        %v976 = vld [vmem:[%s481] sm:$0xff]
        %v977 = vlaneseq
        %v978 = vshrl.u32 %v977, 7
        %v979 = vlaneseq
        %v980 = vand.u32 %v979, 127
        %v981 = vmul.u32 %v978, 16
        %vm982 = vcmp.ge.s32.totalorder %v980, %v981
        %983 = vset.pattern.permute.xlu0 0
        %984 = vperm.xlu0 %983, %v976
        %v985 = vpop.permute.xlu0 %984
        %v986 = vadd.s32 %v981, %v985
        %vm987 = vcmp.lt.s32.totalorder %v980, %v986
        %vm988 = vmand %vm982, %vm987
        %v989 = vld [vmem:[%s486] sm:$0xff]
        %990 = vadd.xlane.f32.xlu0 %v989
        %v991 = vpop.xlane.xlu0 %990
        %v992 = vmul.f32 %v991, %v558
        %v993 = vsub.f32 %v989, %v992
        %v994 = vmul.f32 %v993, %v993
        %995 = vadd.xlane.f32.xlu0 %v994
        %v996 = vpop.xlane.xlu0 %995
        %v997 = vmul.f32 %v996, %v558
        %v998 = vadd.f32 %v997, 1e-05
        %v999 = vrsqrt.pop %v998
        %v1000 = vmul.f32 %v993, %v999
        %v1001 = vmul.f32 %v1000, %v706
        %v1002 = vadd.f32 %v1001, %v726
        %v1003 = vpack.c.bf16 %v1002, %v1002
        %v1004 = vld [vmem:[#allocation5] sm:$0xf]
        %v1005 = vld [vmem:[#allocation5 + $0x4] sm:$0xf]
        %v1006 = vld [vmem:[#allocation5 + $0x8] sm:$0xf]
        %v1007 = vld [vmem:[#allocation5 + $0xc] sm:$0xf]
        %v1008 = vld [vmem:[#allocation5 + $0x10] sm:$0xf]
        %v1009 = vld [vmem:[#allocation5 + $0x14] sm:$0xf]
        %v1010 = vld [vmem:[#allocation5 + $0x18] sm:$0xf]
        %v1011 = vld [vmem:[#allocation5 + $0x1c] sm:$0xf]
        %v1012 = vld [vmem:[#allocation5 + $0x20] sm:$0xf]
        %v1013 = vld [vmem:[#allocation5 + $0x24] sm:$0xf]
        %v1014 = vld [vmem:[#allocation5 + $0x28] sm:$0xf]
        %v1015 = vld [vmem:[#allocation5 + $0x2c] sm:$0xf]
        %v1016 = vld [vmem:[#allocation5 + $0x30] sm:$0xf]
        %v1017 = vld [vmem:[#allocation5 + $0x34] sm:$0xf]
        %v1018 = vld [vmem:[#allocation5 + $0x38] sm:$0xf]
        %v1019 = vld [vmem:[#allocation5 + $0x3c] sm:$0xf]
        %v1036 = vunpack.c.l.b16 %v1004
        %v1037 = vunpack.c.l.b16 %v1005
        %v1038 = vunpack.c.l.b16 %v1006
        %v1039 = vunpack.c.l.b16 %v1007
        %v1040 = vunpack.c.l.b16 %v1008
        %v1041 = vunpack.c.l.b16 %v1009
        %v1042 = vunpack.c.l.b16 %v1010
        %v1043 = vunpack.c.l.b16 %v1011
        %v1044 = vunpack.c.l.b16 %v1012
        %v1045 = vunpack.c.l.b16 %v1013
        %v1046 = vunpack.c.l.b16 %v1014
        %v1047 = vunpack.c.l.b16 %v1015
        %v1048 = vunpack.c.l.b16 %v1016
        %v1049 = vunpack.c.l.b16 %v1017
        %v1050 = vunpack.c.l.b16 %v1018
        %v1051 = vunpack.c.l.b16 %v1019
        %v1052 = vpack.c.b16 %v1037, %v1036
        %v1053 = vpack.c.b16 %v1039, %v1038
        %v1054 = vpack.c.b16 %v1041, %v1040
        %v1055 = vpack.c.b16 %v1043, %v1042
        %v1056 = vpack.c.b16 %v1045, %v1044
        %v1057 = vpack.c.b16 %v1047, %v1046
        %v1058 = vpack.c.b16 %v1049, %v1048
        %v1059 = vpack.c.b16 %v1051, %v1050
        %1068 = vmatprep.subr.bf16.mxu0 0
        %1069 = vmatpush1.bf16.msra.mxu0 %v1059
        %1070 = vmatprep.subr.bf16.mxu0 0
        %1071 = vmatpush1.bf16.msra.mxu0 %v1058
        %1072 = vmatprep.subr.bf16.mxu0 0
        %1073 = vmatpush1.bf16.msra.mxu0 %v1057
        %1074 = vmatprep.subr.bf16.mxu0 0
        %1075 = vmatpush1.bf16.msra.mxu0 %v1056
        %1076 = vmatprep.subr.bf16.mxu0 0
        %1077 = vmatpush1.bf16.msra.mxu0 %v1055
        %1078 = vmatprep.subr.bf16.mxu0 0
        %1079 = vmatpush1.bf16.msra.mxu0 %v1054
        %1080 = vmatprep.subr.bf16.mxu0 0
        %1081 = vmatpush1.bf16.msra.mxu0 %v1053
        %1082 = vmatprep.subr.bf16.mxu0 0
        %1083 = vmatpush1.bf16.msra.mxu0 %v1052
        %1084 = vmatprep.subr.bf16.mxu0 0
        %1085 = vmatpush2.bf16.msra.mxu0 0
        %1086 = vmatprep.subr.bf16.mxu0 0
        %1087 = vmatpush2.bf16.msra.mxu0 0
        %1088 = vmatprep.subr.bf16.mxu0 0
        %1089 = vmatpush2.bf16.msra.mxu0 0
        %1090 = vmatprep.subr.bf16.mxu0 0
        %1091 = vmatpush2.bf16.msra.mxu0 0
        %1092 = vmatprep.subr.bf16.mxu0 0
        %1093 = vmatpush2.bf16.msra.mxu0 0
        %1094 = vmatprep.subr.bf16.mxu0 0
        %1095 = vmatpush2.bf16.msra.mxu0 0
        %1096 = vmatprep.subr.bf16.mxu0 0
        %1097 = vmatpush2.bf16.msra.mxu0 0
        %1098 = vmatprep.subr.bf16.mxu0 0
        %1099 = vmatpush2.bf16.msra.mxu0 0
        %1100 = vmatprep.mubr.bf16.mxu0 0
        %1101 = vmatmul.mubr.bf16.gmra.mxu0 %v1003
        %v1102 = vpop.f32.mrf.mxu0
        %v1103 = vadd.f32 0.0, %v1102
        %v1104 = vpop.f32.mrf.mxu0
        %v1105 = vpop.f32.mrf.mxu0
        %v1106 = vpop.f32.mrf.mxu0
        %1107 = vdwg.mxu0
        %v1108 = vpack.c.bf16 %v1103, %v1103
        %1109 = vmatprep.subr.bf16.mxu0 0
        %1110 = vmatpush1.bf16.xpose.msra.mxu0 %v967
        %1111 = vmatprep.subr.bf16.mxu0 0
        %1112 = vmatpush1.bf16.xpose.msra.mxu0 %v966
        %1113 = vmatprep.subr.bf16.mxu0 0
        %1114 = vmatpush1.bf16.xpose.msra.mxu0 %v965
        %1115 = vmatprep.subr.bf16.mxu0 0
        %1116 = vmatpush1.bf16.xpose.msra.mxu0 %v964
        %1117 = vmatprep.subr.bf16.mxu0 0
        %1118 = vmatpush1.bf16.xpose.msra.mxu0 %v963
        %1119 = vmatprep.subr.bf16.mxu0 0
        %1120 = vmatpush1.bf16.xpose.msra.mxu0 %v962
        %1121 = vmatprep.subr.bf16.mxu0 0
        %1122 = vmatpush1.bf16.xpose.msra.mxu0 %v961
        %1123 = vmatprep.subr.bf16.mxu0 0
        %1124 = vmatpush1.bf16.xpose.msra.mxu0 %v960
        %1125 = vmatprep.subr.bf16.mxu0 0
        %1126 = vmatpush2.bf16.xpose.msra.mxu0 0
        %1127 = vmatprep.subr.bf16.mxu0 0
        %1128 = vmatpush2.bf16.xpose.msra.mxu0 0
        %1129 = vmatprep.subr.bf16.mxu0 0
        %1130 = vmatpush2.bf16.xpose.msra.mxu0 0
        %1131 = vmatprep.subr.bf16.mxu0 0
        %1132 = vmatpush2.bf16.xpose.msra.mxu0 0
        %1133 = vmatprep.subr.bf16.mxu0 0
        %1134 = vmatpush2.bf16.xpose.msra.mxu0 0
        %1135 = vmatprep.subr.bf16.mxu0 0
        %1136 = vmatpush2.bf16.xpose.msra.mxu0 0
        %1137 = vmatprep.subr.bf16.mxu0 0
        %1138 = vmatpush2.bf16.xpose.msra.mxu0 0
        %1139 = vmatprep.subr.bf16.mxu0 0
        %1140 = vmatpush2.bf16.xpose.msra.mxu0 0
        %1141 = vmatprep.mubr.bf16.mxu0 0
        %1142 = vmatmul.mubr.bf16.gmra.mxu0 %v1108
        %v1143 = vpop.f32.mrf.mxu0
        %v1144 = vadd.f32 0.0, %v1143
        %v1145 = vpop.f32.mrf.mxu0
        %v1146 = vpop.f32.mrf.mxu0
        %v1147 = vpop.f32.mrf.mxu0
        %1148 = vdwg.mxu0
        %v1149 = vmul.f32 %v1144, 0.088388346
        %v1150 = vsel %vm988, %v1149, -1e+09
        %1151 = vmax.xlane.f32.xlu0 %v1150
        %v1152 = vpop.xlane.xlu0 %1151
        %v1153 = vsub.f32 %v1150, %v1152
        %v1154 = vmul.f32 %v1153, 1.442695
        %v1155 = vpow.pop %v1154
        %1156 = vadd.xlane.f32.xlu0 %v1155
        %v1157 = vpop.xlane.xlu0 %1156
        %v1158 = vrcp.pop %v1157
        %v1159 = vpack.c.bf16 %v1155, %v1155
        %1160 = vmatprep.subr.bf16.mxu0 0
        %1161 = vmatpush1.bf16.msra.mxu0 %v975
        %1162 = vmatprep.subr.bf16.mxu0 0
        %1163 = vmatpush1.bf16.msra.mxu0 %v974
        %1164 = vmatprep.subr.bf16.mxu0 0
        %1165 = vmatpush1.bf16.msra.mxu0 %v973
        %1166 = vmatprep.subr.bf16.mxu0 0
        %1167 = vmatpush1.bf16.msra.mxu0 %v972
        %1168 = vmatprep.subr.bf16.mxu0 0
        %1169 = vmatpush1.bf16.msra.mxu0 %v971
        %1170 = vmatprep.subr.bf16.mxu0 0
        %1171 = vmatpush1.bf16.msra.mxu0 %v970
        %1172 = vmatprep.subr.bf16.mxu0 0
        %1173 = vmatpush1.bf16.msra.mxu0 %v969
        %1174 = vmatprep.subr.bf16.mxu0 0
        %1175 = vmatpush1.bf16.msra.mxu0 %v968
        %1176 = vmatprep.subr.bf16.mxu0 0
        %1177 = vmatpush2.bf16.msra.mxu0 0
        %1178 = vmatprep.subr.bf16.mxu0 0
        %1179 = vmatpush2.bf16.msra.mxu0 0
        %1180 = vmatprep.subr.bf16.mxu0 0
        %1181 = vmatpush2.bf16.msra.mxu0 0
        %1182 = vmatprep.subr.bf16.mxu0 0
        %1183 = vmatpush2.bf16.msra.mxu0 0
        %1184 = vmatprep.subr.bf16.mxu0 0
        %1185 = vmatpush2.bf16.msra.mxu0 0
        %1186 = vmatprep.subr.bf16.mxu0 0
        %1187 = vmatpush2.bf16.msra.mxu0 0
        %1188 = vmatprep.subr.bf16.mxu0 0
        %1189 = vmatpush2.bf16.msra.mxu0 0
        %1190 = vmatprep.subr.bf16.mxu0 0
        %1191 = vmatpush2.bf16.msra.mxu0 0
        %1192 = vmatprep.mubr.bf16.mxu0 0
        %1193 = vmatmul.mubr.bf16.gmra.mxu0 %v1159
        %v1194 = vpop.f32.mrf.mxu0
        %v1195 = vadd.f32 0.0, %v1194
        %v1196 = vpop.f32.mrf.mxu0
        %v1197 = vpop.f32.mrf.mxu0
        %v1198 = vpop.f32.mrf.mxu0
        %1199 = vdwg.mxu0
        %v1200 = vmul.f32 %v1195, %v1158
        %v1201 = vpack.c.bf16 %v1200, %v1200
        %v1202 = vld [vmem:[#allocation8] sm:$0xf]
        %v1203 = vld [vmem:[#allocation8 + $0x4] sm:$0xf]
        %v1204 = vld [vmem:[#allocation8 + $0x8] sm:$0xf]
        %v1205 = vld [vmem:[#allocation8 + $0xc] sm:$0xf]
        %v1206 = vld [vmem:[#allocation8 + $0x10] sm:$0xf]
        %v1207 = vld [vmem:[#allocation8 + $0x14] sm:$0xf]
        %v1208 = vld [vmem:[#allocation8 + $0x18] sm:$0xf]
        %v1209 = vld [vmem:[#allocation8 + $0x1c] sm:$0xf]
        %v1210 = vld [vmem:[#allocation8 + $0x20] sm:$0xf]
        %v1211 = vld [vmem:[#allocation8 + $0x24] sm:$0xf]
        %v1212 = vld [vmem:[#allocation8 + $0x28] sm:$0xf]
        %v1213 = vld [vmem:[#allocation8 + $0x2c] sm:$0xf]
        %v1214 = vld [vmem:[#allocation8 + $0x30] sm:$0xf]
        %v1215 = vld [vmem:[#allocation8 + $0x34] sm:$0xf]
        %v1216 = vld [vmem:[#allocation8 + $0x38] sm:$0xf]
        %v1217 = vld [vmem:[#allocation8 + $0x3c] sm:$0xf]
        %v1234 = vunpack.c.l.b16 %v1202
        %v1235 = vunpack.c.l.b16 %v1203
        %v1236 = vunpack.c.l.b16 %v1204
        %v1237 = vunpack.c.l.b16 %v1205
        %v1238 = vunpack.c.l.b16 %v1206
        %v1239 = vunpack.c.l.b16 %v1207
        %v1240 = vunpack.c.l.b16 %v1208
        %v1241 = vunpack.c.l.b16 %v1209
        %v1242 = vunpack.c.l.b16 %v1210
        %v1243 = vunpack.c.l.b16 %v1211
        %v1244 = vunpack.c.l.b16 %v1212
        %v1245 = vunpack.c.l.b16 %v1213
        %v1246 = vunpack.c.l.b16 %v1214
        %v1247 = vunpack.c.l.b16 %v1215
        %v1248 = vunpack.c.l.b16 %v1216
        %v1249 = vunpack.c.l.b16 %v1217
        %v1250 = vpack.c.b16 %v1235, %v1234
        %v1251 = vpack.c.b16 %v1237, %v1236
        %v1252 = vpack.c.b16 %v1239, %v1238
        %v1253 = vpack.c.b16 %v1241, %v1240
        %v1254 = vpack.c.b16 %v1243, %v1242
        %v1255 = vpack.c.b16 %v1245, %v1244
        %v1256 = vpack.c.b16 %v1247, %v1246
        %v1257 = vpack.c.b16 %v1249, %v1248
        %1266 = vmatprep.subr.bf16.mxu0 0
        %1267 = vmatpush1.bf16.msra.mxu0 %v1257
        %1268 = vmatprep.subr.bf16.mxu0 0
        %1269 = vmatpush1.bf16.msra.mxu0 %v1256
        %1270 = vmatprep.subr.bf16.mxu0 0
        %1271 = vmatpush1.bf16.msra.mxu0 %v1255
        %1272 = vmatprep.subr.bf16.mxu0 0
        %1273 = vmatpush1.bf16.msra.mxu0 %v1254
        %1274 = vmatprep.subr.bf16.mxu0 0
        %1275 = vmatpush1.bf16.msra.mxu0 %v1253
        %1276 = vmatprep.subr.bf16.mxu0 0
        %1277 = vmatpush1.bf16.msra.mxu0 %v1252
        %1278 = vmatprep.subr.bf16.mxu0 0
        %1279 = vmatpush1.bf16.msra.mxu0 %v1251
        %1280 = vmatprep.subr.bf16.mxu0 0
        %1281 = vmatpush1.bf16.msra.mxu0 %v1250
        %1282 = vmatprep.subr.bf16.mxu0 0
        %1283 = vmatpush2.bf16.msra.mxu0 0
        %1284 = vmatprep.subr.bf16.mxu0 0
        %1285 = vmatpush2.bf16.msra.mxu0 0
        %1286 = vmatprep.subr.bf16.mxu0 0
        %1287 = vmatpush2.bf16.msra.mxu0 0
        %1288 = vmatprep.subr.bf16.mxu0 0
        %1289 = vmatpush2.bf16.msra.mxu0 0
        %1290 = vmatprep.subr.bf16.mxu0 0
        %1291 = vmatpush2.bf16.msra.mxu0 0
        %1292 = vmatprep.subr.bf16.mxu0 0
        %1293 = vmatpush2.bf16.msra.mxu0 0
        %1294 = vmatprep.subr.bf16.mxu0 0
        %1295 = vmatpush2.bf16.msra.mxu0 0
        %1296 = vmatprep.subr.bf16.mxu0 0
        %1297 = vmatpush2.bf16.msra.mxu0 0
        %1298 = vmatprep.mubr.bf16.mxu0 0
        %1299 = vmatmul.mubr.bf16.gmra.mxu0 %v1201
        %v1300 = vpop.f32.mrf.mxu0
        %v1301 = vadd.f32 0.0, %v1300
        %v1302 = vpop.f32.mrf.mxu0
        %v1303 = vpop.f32.mrf.mxu0
        %v1304 = vpop.f32.mrf.mxu0
        %1305 = vdwg.mxu0
        %v1306 = vadd.f32 %v989, %v1301
        %1307 = vadd.xlane.f32.xlu0 %v1306
        %v1308 = vpop.xlane.xlu0 %1307
        %v1309 = vmul.f32 %v1308, %v558
        %v1310 = vsub.f32 %v1306, %v1309
        %v1311 = vmul.f32 %v1310, %v1310
        %1312 = vadd.xlane.f32.xlu0 %v1311
        %v1313 = vpop.xlane.xlu0 %1312
        %v1314 = vmul.f32 %v1313, %v558
        %v1315 = vadd.f32 %v1314, 1e-05
        %v1316 = vrsqrt.pop %v1315
        %v1317 = vmul.f32 %v1310, %v1316
        %v1318 = vlaneseq
        %v1319 = vshrl.u32 %v1318, 7
        %v1320 = vsub.s32 0, %v1319
        %v1321 = vrot.slane %v490, %v1320
        %v1322 = vmul.f32 %v1317, %v1321
        %v1323 = vlaneseq
        %v1324 = vshrl.u32 %v1323, 7
        %v1325 = vsub.s32 0, %v1324
        %v1326 = vrot.slane %v491, %v1325
        %v1327 = vadd.f32 %v1322, %v1326
        %v1328 = vpack.c.bf16 %v1327, %v1327
        %v1329 = vld [vmem:[#allocation10] sm:$0xff]
        %v1330 = vld [vmem:[#allocation10 + $0x8] sm:$0xff]
        %v1331 = vld [vmem:[#allocation10 + $0x10] sm:$0xff]
        %v1332 = vld [vmem:[#allocation10 + $0x18] sm:$0xff]
        %v1333 = vld [vmem:[#allocation10 + $0x20] sm:$0xff]
        %v1334 = vld [vmem:[#allocation10 + $0x28] sm:$0xff]
        %v1335 = vld [vmem:[#allocation10 + $0x30] sm:$0xff]
        %v1336 = vld [vmem:[#allocation10 + $0x38] sm:$0xff]
        %v1337 = vld [vmem:[#allocation10 + $0x40] sm:$0xff]
        %v1338 = vld [vmem:[#allocation10 + $0x48] sm:$0xff]
        %v1339 = vld [vmem:[#allocation10 + $0x50] sm:$0xff]
        %v1340 = vld [vmem:[#allocation10 + $0x58] sm:$0xff]
        %v1341 = vld [vmem:[#allocation10 + $0x60] sm:$0xff]
        %v1342 = vld [vmem:[#allocation10 + $0x68] sm:$0xff]
        %v1343 = vld [vmem:[#allocation10 + $0x70] sm:$0xff]
        %v1344 = vld [vmem:[#allocation10 + $0x78] sm:$0xff]
        %v1346 = vlaneseq
        %v1347 = vshrl.u32 %v1346, 7
        %v1348 = vsub.s32 0, %v1347
        %v1349 = vrot.slane %v492, %v1348
        %v1350 = vlaneseq
        %v1351 = vshrl.u32 %v1350, 7
        %v1352 = vsub.s32 1, %v1351
        %v1353 = vrot.slane %v492, %v1352
        %v1372 = vunpack.c.l.b16 %v1329
        %v1373 = vunpack.c.h.b16 %v1329
        %v1374 = vunpack.c.l.b16 %v1330
        %v1375 = vunpack.c.h.b16 %v1330
        %v1376 = vunpack.c.l.b16 %v1331
        %v1377 = vunpack.c.h.b16 %v1331
        %v1378 = vunpack.c.l.b16 %v1332
        %v1379 = vunpack.c.h.b16 %v1332
        %v1380 = vunpack.c.l.b16 %v1333
        %v1381 = vunpack.c.h.b16 %v1333
        %v1382 = vunpack.c.l.b16 %v1334
        %v1383 = vunpack.c.h.b16 %v1334
        %v1384 = vunpack.c.l.b16 %v1335
        %v1385 = vunpack.c.h.b16 %v1335
        %v1386 = vunpack.c.l.b16 %v1336
        %v1387 = vunpack.c.h.b16 %v1336
        %v1388 = vunpack.c.l.b16 %v1337
        %v1389 = vunpack.c.h.b16 %v1337
        %v1390 = vunpack.c.l.b16 %v1338
        %v1391 = vunpack.c.h.b16 %v1338
        %v1392 = vunpack.c.l.b16 %v1339
        %v1393 = vunpack.c.h.b16 %v1339
        %v1394 = vunpack.c.l.b16 %v1340
        %v1395 = vunpack.c.h.b16 %v1340
        %v1396 = vunpack.c.l.b16 %v1341
        %v1397 = vunpack.c.h.b16 %v1341
        %v1398 = vunpack.c.l.b16 %v1342
        %v1399 = vunpack.c.h.b16 %v1342
        %v1400 = vunpack.c.l.b16 %v1343
        %v1401 = vunpack.c.h.b16 %v1343
        %v1402 = vunpack.c.l.b16 %v1344
        %v1403 = vunpack.c.h.b16 %v1344
        %v1404 = vpack.c.b16 %v1374, %v1372
        %v1405 = vpack.c.b16 %v1375, %v1373
        %v1406 = vpack.c.b16 %v1378, %v1376
        %v1407 = vpack.c.b16 %v1379, %v1377
        %v1408 = vpack.c.b16 %v1382, %v1380
        %v1409 = vpack.c.b16 %v1383, %v1381
        %v1410 = vpack.c.b16 %v1386, %v1384
        %v1411 = vpack.c.b16 %v1387, %v1385
        %v1412 = vpack.c.b16 %v1390, %v1388
        %v1413 = vpack.c.b16 %v1391, %v1389
        %v1414 = vpack.c.b16 %v1394, %v1392
        %v1415 = vpack.c.b16 %v1395, %v1393
        %v1416 = vpack.c.b16 %v1398, %v1396
        %v1417 = vpack.c.b16 %v1399, %v1397
        %v1418 = vpack.c.b16 %v1402, %v1400
        %v1419 = vpack.c.b16 %v1403, %v1401
        %1436 = vmatprep.subr.bf16.mxu0 %v1419
        %1437 = vmatpush1.bf16.msra.mxu0 %v1418
        %1438 = vmatprep.subr.bf16.mxu0 %v1417
        %1439 = vmatpush1.bf16.msra.mxu0 %v1416
        %1440 = vmatprep.subr.bf16.mxu0 %v1415
        %1441 = vmatpush1.bf16.msra.mxu0 %v1414
        %1442 = vmatprep.subr.bf16.mxu0 %v1413
        %1443 = vmatpush1.bf16.msra.mxu0 %v1412
        %1444 = vmatprep.subr.bf16.mxu0 %v1411
        %1445 = vmatpush1.bf16.msra.mxu0 %v1410
        %1446 = vmatprep.subr.bf16.mxu0 %v1409
        %1447 = vmatpush1.bf16.msra.mxu0 %v1408
        %1448 = vmatprep.subr.bf16.mxu0 %v1407
        %1449 = vmatpush1.bf16.msra.mxu0 %v1406
        %1450 = vmatprep.subr.bf16.mxu0 %v1405
        %1451 = vmatpush1.bf16.msra.mxu0 %v1404
        %1452 = vmatprep.subr.bf16.mxu0 0
        %1453 = vmatpush2.bf16.msra.mxu0 0
        %1454 = vmatprep.subr.bf16.mxu0 0
        %1455 = vmatpush2.bf16.msra.mxu0 0
        %1456 = vmatprep.subr.bf16.mxu0 0
        %1457 = vmatpush2.bf16.msra.mxu0 0
        %1458 = vmatprep.subr.bf16.mxu0 0
        %1459 = vmatpush2.bf16.msra.mxu0 0
        %1460 = vmatprep.subr.bf16.mxu0 0
        %1461 = vmatpush2.bf16.msra.mxu0 0
        %1462 = vmatprep.subr.bf16.mxu0 0
        %1463 = vmatpush2.bf16.msra.mxu0 0
        %1464 = vmatprep.subr.bf16.mxu0 0
        %1465 = vmatpush2.bf16.msra.mxu0 0
        %1466 = vmatprep.subr.bf16.mxu0 0
        %1467 = vmatpush2.bf16.msra.mxu0 0
        %1468 = vmatprep.mubr.bf16.mxu0 0
        %1469 = vmatmul.mubr.bf16.gmra.mxu0 %v1328
        %v1470 = vpop.f32.mrf.mxu0
        %v1471 = vadd.f32 %v1349, %v1470
        %v1472 = vpop.f32.mrf.mxu0
        %v1473 = vadd.f32 %v1353, %v1472
        %v1474 = vpop.f32.mrf.mxu0
        %v1475 = vpop.f32.mrf.mxu0
        %1476 = vdwg.mxu0
        %v1477 = vmax.f32 %v1471, 0.0
        %v1478 = vmax.f32 %v1473, 0.0
        %v1479 = vpack.c.bf16 %v1477, %v1477
        %v1480 = vpack.c.bf16 %v1478, %v1478
        %v1481 = vld [vmem:[#allocation11] sm:$0xf]
        %v1482 = vld [vmem:[#allocation11 + $0x4] sm:$0xf]
        %v1483 = vld [vmem:[#allocation11 + $0x8] sm:$0xf]
        %v1484 = vld [vmem:[#allocation11 + $0xc] sm:$0xf]
        %v1485 = vld [vmem:[#allocation11 + $0x10] sm:$0xf]
        %v1486 = vld [vmem:[#allocation11 + $0x14] sm:$0xf]
        %v1487 = vld [vmem:[#allocation11 + $0x18] sm:$0xf]
        %v1488 = vld [vmem:[#allocation11 + $0x1c] sm:$0xf]
        %v1489 = vld [vmem:[#allocation11 + $0x20] sm:$0xf]
        %v1490 = vld [vmem:[#allocation11 + $0x24] sm:$0xf]
        %v1491 = vld [vmem:[#allocation11 + $0x28] sm:$0xf]
        %v1492 = vld [vmem:[#allocation11 + $0x2c] sm:$0xf]
        %v1493 = vld [vmem:[#allocation11 + $0x30] sm:$0xf]
        %v1494 = vld [vmem:[#allocation11 + $0x34] sm:$0xf]
        %v1495 = vld [vmem:[#allocation11 + $0x38] sm:$0xf]
        %v1496 = vld [vmem:[#allocation11 + $0x3c] sm:$0xf]
        %v1497 = vld [vmem:[#allocation11 + $0x40] sm:$0xf]
        %v1498 = vld [vmem:[#allocation11 + $0x44] sm:$0xf]
        %v1499 = vld [vmem:[#allocation11 + $0x48] sm:$0xf]
        %v1500 = vld [vmem:[#allocation11 + $0x4c] sm:$0xf]
        %v1501 = vld [vmem:[#allocation11 + $0x50] sm:$0xf]
        %v1502 = vld [vmem:[#allocation11 + $0x54] sm:$0xf]
        %v1503 = vld [vmem:[#allocation11 + $0x58] sm:$0xf]
        %v1504 = vld [vmem:[#allocation11 + $0x5c] sm:$0xf]
        %v1505 = vld [vmem:[#allocation11 + $0x60] sm:$0xf]
        %v1506 = vld [vmem:[#allocation11 + $0x64] sm:$0xf]
        %v1507 = vld [vmem:[#allocation11 + $0x68] sm:$0xf]
        %v1508 = vld [vmem:[#allocation11 + $0x6c] sm:$0xf]
        %v1509 = vld [vmem:[#allocation11 + $0x70] sm:$0xf]
        %v1510 = vld [vmem:[#allocation11 + $0x74] sm:$0xf]
        %v1511 = vld [vmem:[#allocation11 + $0x78] sm:$0xf]
        %v1512 = vld [vmem:[#allocation11 + $0x7c] sm:$0xf]
        %v1514 = vlaneseq
        %v1515 = vshrl.u32 %v1514, 7
        %v1516 = vsub.s32 0, %v1515
        %v1517 = vrot.slane %v493, %v1516
        %v1551 = vunpack.c.l.b16 %v1481
        %v1552 = vunpack.c.l.b16 %v1482
        %v1553 = vunpack.c.l.b16 %v1483
        %v1554 = vunpack.c.l.b16 %v1484
        %v1555 = vunpack.c.l.b16 %v1485
        %v1556 = vunpack.c.l.b16 %v1486
        %v1557 = vunpack.c.l.b16 %v1487
        %v1558 = vunpack.c.l.b16 %v1488
        %v1559 = vunpack.c.l.b16 %v1489
        %v1560 = vunpack.c.l.b16 %v1490
        %v1561 = vunpack.c.l.b16 %v1491
        %v1562 = vunpack.c.l.b16 %v1492
        %v1563 = vunpack.c.l.b16 %v1493
        %v1564 = vunpack.c.l.b16 %v1494
        %v1565 = vunpack.c.l.b16 %v1495
        %v1566 = vunpack.c.l.b16 %v1496
        %v1567 = vunpack.c.l.b16 %v1497
        %v1568 = vunpack.c.l.b16 %v1498
        %v1569 = vunpack.c.l.b16 %v1499
        %v1570 = vunpack.c.l.b16 %v1500
        %v1571 = vunpack.c.l.b16 %v1501
        %v1572 = vunpack.c.l.b16 %v1502
        %v1573 = vunpack.c.l.b16 %v1503
        %v1574 = vunpack.c.l.b16 %v1504
        %v1575 = vunpack.c.l.b16 %v1505
        %v1576 = vunpack.c.l.b16 %v1506
        %v1577 = vunpack.c.l.b16 %v1507
        %v1578 = vunpack.c.l.b16 %v1508
        %v1579 = vunpack.c.l.b16 %v1509
        %v1580 = vunpack.c.l.b16 %v1510
        %v1581 = vunpack.c.l.b16 %v1511
        %v1582 = vunpack.c.l.b16 %v1512
        %v1583 = vpack.c.b16 %v1552, %v1551
        %v1584 = vpack.c.b16 %v1554, %v1553
        %v1585 = vpack.c.b16 %v1556, %v1555
        %v1586 = vpack.c.b16 %v1558, %v1557
        %v1587 = vpack.c.b16 %v1560, %v1559
        %v1588 = vpack.c.b16 %v1562, %v1561
        %v1589 = vpack.c.b16 %v1564, %v1563
        %v1590 = vpack.c.b16 %v1566, %v1565
        %v1591 = vpack.c.b16 %v1568, %v1567
        %v1592 = vpack.c.b16 %v1570, %v1569
        %v1593 = vpack.c.b16 %v1572, %v1571
        %v1594 = vpack.c.b16 %v1574, %v1573
        %v1595 = vpack.c.b16 %v1576, %v1575
        %v1596 = vpack.c.b16 %v1578, %v1577
        %v1597 = vpack.c.b16 %v1580, %v1579
        %v1598 = vpack.c.b16 %v1582, %v1581
        %1615 = vmatprep.subr.bf16.mxu0 0
        %1616 = vmatpush1.bf16.msra.mxu0 %v1590
        %1617 = vmatprep.subr.bf16.mxu0 0
        %1618 = vmatpush1.bf16.msra.mxu0 %v1589
        %1619 = vmatprep.subr.bf16.mxu0 0
        %1620 = vmatpush1.bf16.msra.mxu0 %v1588
        %1621 = vmatprep.subr.bf16.mxu0 0
        %1622 = vmatpush1.bf16.msra.mxu0 %v1587
        %1623 = vmatprep.subr.bf16.mxu0 0
        %1624 = vmatpush1.bf16.msra.mxu0 %v1586
        %1625 = vmatprep.subr.bf16.mxu0 0
        %1626 = vmatpush1.bf16.msra.mxu0 %v1585
        %1627 = vmatprep.subr.bf16.mxu0 0
        %1628 = vmatpush1.bf16.msra.mxu0 %v1584
        %1629 = vmatprep.subr.bf16.mxu0 0
        %1630 = vmatpush1.bf16.msra.mxu0 %v1583
        %1631 = vmatprep.subr.bf16.mxu0 0
        %1632 = vmatpush2.bf16.msra.mxu0 %v1598
        %1633 = vmatprep.subr.bf16.mxu0 0
        %1634 = vmatpush2.bf16.msra.mxu0 %v1597
        %1635 = vmatprep.subr.bf16.mxu0 0
        %1636 = vmatpush2.bf16.msra.mxu0 %v1596
        %1637 = vmatprep.subr.bf16.mxu0 0
        %1638 = vmatpush2.bf16.msra.mxu0 %v1595
        %1639 = vmatprep.subr.bf16.mxu0 0
        %1640 = vmatpush2.bf16.msra.mxu0 %v1594
        %1641 = vmatprep.subr.bf16.mxu0 0
        %1642 = vmatpush2.bf16.msra.mxu0 %v1593
        %1643 = vmatprep.subr.bf16.mxu0 0
        %1644 = vmatpush2.bf16.msra.mxu0 %v1592
        %1645 = vmatprep.subr.bf16.mxu0 0
        %1646 = vmatpush2.bf16.msra.mxu0 %v1591
        %1647 = vmatprep.mubr.bf16.mxu0 %v1480
        %1648 = vmatmul.mubr.bf16.gmra.mxu0 %v1479
        %v1649 = vpop.f32.mrf.mxu0
        %v1650 = vadd.f32 %v1517, %v1649
        %v1651 = vpop.f32.mrf.mxu0
        %v1652 = vpop.f32.mrf.mxu0
        %v1653 = vpop.f32.mrf.mxu0
        %1654 = vdwg.mxu0
        %v1655 = vadd.f32 %v1306, %v1650
        %1656 = vst [vmem:[%s477] sm:$0xff] %v1655
        %s1657 = sand.u32 %s263, 1
        %s1658 = scalar_lea.sflag [#allocation4], %s1657
        %s1659 = sand.u32 %s263, 1
        %s1660 = smul.addr %s1659, 8
        %s1661 = scalar_lea.vmem [#allocation13], %s1660
        // Predicated region
        $region85: #{tpu_custom_call.1} parent=59 // pred_check
          %p1662 = pneg %p273
        $region86: #{tpu_custom_call.1} parent=59 // pred_check_branch
          %1664 = sbr.rel (%p1662) target = $region88
        $region87: #{tpu_custom_call.1} parent=59 // pred_region
          %s1666 = ssub.s32 128, 128
          %1667 = vsyncadd %s1658, %s1666
          %s1668 = smul.addr %s30, 128
          %s1669 = scalar_lea.hbm %s10, %s1668
          %s1671 = sshll.u32 %s1661, 4
          %s1672 = int_to_ptr.vmem [resolvable:$true] %s1671
          %1674 = dma.vmem_to_hbm [thread:$0]  %s1672, 128, %s1669, %s1658
        $region88: #{tpu_custom_call.1} parent=59 // pred_fallthru
          _
      $region60: #{tpu_custom_call.1} parent=5 // pred_fallthru
        _
      %p1675 = scmp.le.s32.totalorder 2, %s25
      // Predicated region
      $region89: #{tpu_custom_call.1} parent=5 // pred_check
        %p1676 = pneg %p1675
      $region90: #{tpu_custom_call.1} parent=5 // pred_check_branch
        %1678 = sbr.rel (%p1676) target = $region92
      $region91: #{tpu_custom_call.1} parent=5 // pred_region
        %s1679 = ssub.s32 %s25, 2
        // Predicated region
        $region93: #{tpu_custom_call.1} parent=91 // pred_check
          %p1680 = pneg %p279
        $region94: #{tpu_custom_call.1} parent=91 // pred_check_branch
          %1682 = sbr.rel (%p1680) target = $region96
        $region95: #{tpu_custom_call.1} parent=91 // pred_region
          %s1683 = sand.u32 %s264, 1
          %s1684 = scalar_lea.sflag [#allocation4], %s1683
          %s1685 = sand.u32 %s264, 1
          %s1686 = smul.addr %s1685, 8
          %s1687 = scalar_lea.vmem [#allocation13], %s1686
          %1688 = dma.done %s1684, 128
        $region96: #{tpu_custom_call.1} parent=91 // pred_fallthru
          _
      $region92: #{tpu_custom_call.1} parent=5 // pred_fallthru
        _
    $region6: #{tpu_custom_call.1} parent=1 // loop_footer
      %s29 = sadd.s32 1, %s25
    $region7: #{tpu_custom_call.1} parent=1 // loop_footer_branch
      %24 = sbr.rel target = $region3
    $region8: #{tpu_custom_call.1} parent=1 // loop_exit
      _
    %1689 = vsyncpa [#allocation3], 1
    %s1690 = scalar_lea.sflag [#allocation3], 1
    %1691 = vsyncpa %s1690, 1
    %1692 = vsyncpa [#allocation6], 1
    %1693 = vsyncpa [#allocation9], 1
    %1694 = vsyncpa [#allocation12], 1
    %1695 = vsyncpa [#allocation4], 1
    %s1696 = scalar_lea.sflag [#allocation4], 1
    %1697 = vsyncpa %s1696, 1

</llo_original>
